<compile_context>
chip_gen: v5e
topology: v5e:2x2
jax: 0.10.0
libtpu: 0.0.40
codegen_flags: <defaults>
</compile_context>

<pallas_src>
import jax
import jax.numpy as jnp
from jax.experimental import pallas as pl
from jax.experimental.pallas import tpu as pltpu

OBS_DIM = 3
ACT_DIM = 1
HIDDEN = 256
ACT_LIMIT = 2.0
LANE = 128


def _cdiv(a, b):
    return (a + b - 1) // b


def _round_up(a, m):
    return _cdiv(a, m) * m


def actor_kernel(xt_ref, w1t_ref, b1_ref, w2t_ref, b2_ref, w3_ref, b3_ref, o_ref):
    # Batch lives on lanes throughout; activations are (HIDDEN, tile_b).
    xt = xt_ref[...]                                        # (OBS_DIM, tile_b) f32

    # ---- Layer 1: W1^T @ x^T + b1, ReLU (VPU; K=3 too small for the MXU) ----
    h = w1t_ref[:, 0:1] * xt[0:1, :]                        # (HIDDEN, tile_b)
    for d in range(1, OBS_DIM):
        h = h + w1t_ref[:, d:d + 1] * xt[d:d + 1, :]
    h = jnp.maximum(h + b1_ref[...], 0.0)                   # f32 elementwise

    # ---- Layer 2: W2^T @ h + b2, ReLU (the real matmul: bf16 MXU, f32 acc) ---
    h = jnp.dot(w2t_ref[...], h.astype(jnp.bfloat16),
                preferred_element_type=jnp.float32)         # (HIDDEN, tile_b)
    h = jnp.maximum(h + b2_ref[...], 0.0)

    # ---- Layer 3: w3 . h + b3, tanh, scale (cross-sublane XLU reduction) ----
    # Result is already batch-on-lanes -> lane-dense, unmasked stores.
    a = jnp.sum(h * w3_ref[...], axis=0, keepdims=True)     # (1, tile_b)
    o_ref[...] = (ACT_LIMIT * jnp.tanh(a + b3_ref[...])).astype(o_ref.dtype)


def actor_forward(x, params, tile_b=1024):
    """x: (B, OBS_DIM) f32; params: dict of W1,b1,W2,b2,W3,b3. Returns (B, ACT_DIM)."""
    B = x.shape[0]

    # Batch is the lane dimension -> tile must be a multiple of 128.
    tile_b = max(LANE, (tile_b // LANE) * LANE)
    # Keep >= 2 grid steps when the batch allows it (v7x has 2 TensorCores and
    # the "parallel" axis only splits across them with >= 2 steps).
    if B > LANE:
        tile_b = min(tile_b, _round_up(_cdiv(B, 2), LANE))
    else:
        tile_b = LANE
    Bp = _round_up(B, tile_b)

    # Layout plumbing in the wrapper (tiny: 12 B/row of input, 4 B/row output).
    xt = x.astype(jnp.float32).T                            # (OBS_DIM, B)
    if Bp != B:
        xt = jnp.pad(xt, ((0, 0), (0, Bp - B)))

    w1t = params["W1"].T.astype(jnp.float32)                # (HIDDEN, OBS_DIM)
    b1c = params["b1"].reshape(HIDDEN, 1).astype(jnp.float32)
    w2t = params["W2"].T.astype(jnp.bfloat16)               # dominant weight: halve DMA
    b2c = params["b2"].reshape(HIDDEN, 1).astype(jnp.float32)
    w3c = params["W3"].astype(jnp.float32)                  # (HIDDEN, ACT_DIM)
    b3c = params["b3"].reshape(1, ACT_DIM).astype(jnp.float32)

    n_tiles = Bp // tile_b
    flops = 2 * Bp * (OBS_DIM * HIDDEN + HIDDEN * HIDDEN + HIDDEN * ACT_DIM)
    bytes_accessed = (xt.size * 4 + w1t.size * 4 + b1c.size * 4 + w2t.size * 2
                      + b2c.size * 4 + w3c.size * 4 + b3c.size * 4
                      + Bp * ACT_DIM * 4)

    out = pl.pallas_call(
        actor_kernel,
        out_shape=jax.ShapeDtypeStruct((1, Bp), jnp.float32),
        grid=(n_tiles,),
        in_specs=[
            pl.BlockSpec((OBS_DIM, tile_b), lambda i: (0, i)),  # x^T: per-tile
            pl.BlockSpec((HIDDEN, OBS_DIM), lambda i: (0, 0)),  # W1^T: resident
            pl.BlockSpec((HIDDEN, 1), lambda i: (0, 0)),        # b1:   resident
            pl.BlockSpec((HIDDEN, HIDDEN), lambda i: (0, 0)),   # W2^T: resident
            pl.BlockSpec((HIDDEN, 1), lambda i: (0, 0)),        # b2:   resident
            pl.BlockSpec((HIDDEN, ACT_DIM), lambda i: (0, 0)),  # W3:   resident
            pl.BlockSpec((1, ACT_DIM), lambda i: (0, 0)),       # b3:   resident
        ],
        out_specs=pl.BlockSpec((1, tile_b), lambda i: (0, i)),  # lane-dense, compact
        compiler_params=pltpu.CompilerParams(
            dimension_semantics=("parallel",)),
        cost_estimate=pl.CostEstimate(flops=flops, transcendentals=Bp,
                                      bytes_accessed=bytes_accessed),
    )(xt, w1t, b1c, w2t, b2c, w3c, b3c)

    # (1, Bp) -> (Bp, 1) is a free row-major reshape (ACT_DIM == 1); slice pad off.
    return out.reshape(Bp, ACT_DIM)[:B]


def init_params(key):
    """Deterministic synthetic init (PyTorch-Linear-like uniform fan-in)."""
    ks = jax.random.split(key, 6)

    def lin(kw, kb, fan_in, fan_out):
        bound = 1.0 / jnp.sqrt(float(fan_in))
        W = jax.random.uniform(kw, (fan_in, fan_out), jnp.float32, -bound, bound)
        b = jax.random.uniform(kb, (1, fan_out), jnp.float32, -bound, bound)
        return W, b

    W1, b1 = lin(ks[0], ks[1], OBS_DIM, HIDDEN)
    W2, b2 = lin(ks[2], ks[3], HIDDEN, HIDDEN)
    W3, b3 = lin(ks[4], ks[5], HIDDEN, ACT_DIM)
    return {"W1": W1, "b1": b1, "W2": W2, "b2": b2, "W3": W3, "b3": b3}


def actor_ref(x, p):
    """Full-f32 JAX reference (matches the PyTorch module)."""
    h1 = jnp.maximum(x @ p["W1"] + p["b1"], 0.0)
    h2 = jnp.maximum(h1 @ p["W2"] + p["b2"], 0.0)
    return ACT_LIMIT * jnp.tanh(h2 @ p["W3"] + p["b3"])


if __name__ == "__main__":
    key = jax.random.PRNGKey(0)
    kp, kx, kx2 = jax.random.split(key, 3)
    params = init_params(kp)

    # Small test: batch of 8 observations (single grid step, padded to 128 lanes).
    B = 8
    x = jax.random.normal(kx, (B, OBS_DIM), jnp.float32)
    out = jax.block_until_ready(actor_forward(x, params))
    ref = actor_ref(x, params)
    assert out.shape == (B, ACT_DIM)
    # bf16 weights/activations for layer 2 -> loosened tolerance vs f32 reference.
    assert jnp.allclose(out, ref, atol=2e-2, rtol=2e-2), "mismatch vs JAX reference (B=8)"

    # Ragged batch exercising multi-tile grid + padding (2 grid steps of 128).
    B2 = 200
    x2 = jax.random.normal(kx2, (B2, OBS_DIM), jnp.float32)
    out2 = jax.block_until_ready(actor_forward(x2, params, tile_b=1024))
    ref2 = actor_ref(x2, params)
    assert out2.shape == (B2, ACT_DIM)
    assert jnp.allclose(out2, ref2, atol=2e-2, rtol=2e-2), "mismatch vs JAX reference (B=200)"

    print("KERNEL_OK")
</pallas_src>

<mosaic_0001>
module attributes {stable_mosaic.version = 11 : i64} {
  func.func @actor_kernel(%arg0: i32, %arg1: memref<3x128xf32, #tpu.memory_space<vmem>>, %arg2: memref<256x3xf32, #tpu.memory_space<vmem>>, %arg3: memref<256x1xf32, #tpu.memory_space<vmem>>, %arg4: memref<256x256xbf16, #tpu.memory_space<vmem>>, %arg5: memref<256x1xf32, #tpu.memory_space<vmem>>, %arg6: memref<256x1xf32, #tpu.memory_space<vmem>>, %arg7: memref<1x1xf32, #tpu.memory_space<vmem>>, %arg8: memref<1x128xf32, #tpu.memory_space<vmem>>) attributes {dimension_semantics = [#tpu.dimension_semantics<parallel>], iteration_bounds = array<i64: 1>, scalar_prefetch = 0 : i64, scratch_operands = 0 : i64, tpu.core_type = #tpu.core_type<tc>, window_params = [{transform_indices = @transform_0, window_bounds = array<i64: 3, 128>}, {pipeline_mode = #tpu.pipeline_mode<synchronous>, transform_indices = @transform_1, window_bounds = array<i64: 256, 3>}, {pipeline_mode = #tpu.pipeline_mode<synchronous>, transform_indices = @transform_2, window_bounds = array<i64: 256, 1>}, {pipeline_mode = #tpu.pipeline_mode<synchronous>, transform_indices = @transform_3, window_bounds = array<i64: 256, 256>}, {pipeline_mode = #tpu.pipeline_mode<synchronous>, transform_indices = @transform_4, window_bounds = array<i64: 256, 1>}, {pipeline_mode = #tpu.pipeline_mode<synchronous>, transform_indices = @transform_5, window_bounds = array<i64: 256, 1>}, {pipeline_mode = #tpu.pipeline_mode<synchronous>, transform_indices = @transform_6, window_bounds = array<i64: 1, 1>}, {transform_indices = @transform_7, window_bounds = array<i64: 1, 128>}]} {
    %c0 = arith.constant 0 : index
    %c0_0 = arith.constant 0 : index
    %0 = vector.load %arg1[%c0, %c0_0] : memref<3x128xf32, #tpu.memory_space<vmem>>, vector<3x128xf32>
    %c0_1 = arith.constant 0 : index
    %c0_2 = arith.constant 0 : index
    %1 = vector.load %arg2[%c0_1, %c0_2] : memref<256x3xf32, #tpu.memory_space<vmem>>, vector<256x1xf32>
    %2 = vector.extract_strided_slice %0 {offsets = [0, 0], sizes = [1, 128], strides = [1, 1]} : vector<3x128xf32> to vector<1x128xf32>
    %3 = vector.broadcast %1 : vector<256x1xf32> to vector<256x128xf32>
    %4 = vector.broadcast %2 : vector<1x128xf32> to vector<256x128xf32>
    %5 = arith.mulf %3, %4 : vector<256x128xf32>
    %c0_3 = arith.constant 0 : index
    %c1 = arith.constant 1 : index
    %6 = vector.load %arg2[%c0_3, %c1] : memref<256x3xf32, #tpu.memory_space<vmem>>, vector<256x1xf32>
    %7 = vector.extract_strided_slice %0 {offsets = [1, 0], sizes = [1, 128], strides = [1, 1]} : vector<3x128xf32> to vector<1x128xf32>
    %8 = vector.broadcast %6 : vector<256x1xf32> to vector<256x128xf32>
    %9 = vector.broadcast %7 : vector<1x128xf32> to vector<256x128xf32>
    %10 = arith.mulf %8, %9 : vector<256x128xf32>
    %11 = arith.addf %5, %10 : vector<256x128xf32>
    %c0_4 = arith.constant 0 : index
    %c2 = arith.constant 2 : index
    %12 = vector.load %arg2[%c0_4, %c2] : memref<256x3xf32, #tpu.memory_space<vmem>>, vector<256x1xf32>
    %13 = vector.extract_strided_slice %0 {offsets = [2, 0], sizes = [1, 128], strides = [1, 1]} : vector<3x128xf32> to vector<1x128xf32>
    %14 = vector.broadcast %12 : vector<256x1xf32> to vector<256x128xf32>
    %15 = vector.broadcast %13 : vector<1x128xf32> to vector<256x128xf32>
    %16 = arith.mulf %14, %15 : vector<256x128xf32>
    %17 = arith.addf %11, %16 : vector<256x128xf32>
    %c0_5 = arith.constant 0 : index
    %c0_6 = arith.constant 0 : index
    %18 = vector.load %arg3[%c0_5, %c0_6] : memref<256x1xf32, #tpu.memory_space<vmem>>, vector<256x1xf32>
    %19 = vector.broadcast %18 : vector<256x1xf32> to vector<256x128xf32>
    %20 = arith.addf %17, %19 : vector<256x128xf32>
    %cst = arith.constant 0.000000e+00 : f32
    %21 = vector.broadcast %cst : f32 to vector<256x128xf32>
    %22 = arith.maximumf %20, %21 : vector<256x128xf32>
    %c0_7 = arith.constant 0 : index
    %c0_8 = arith.constant 0 : index
    %23 = vector.load %arg4[%c0_7, %c0_8] : memref<256x256xbf16, #tpu.memory_space<vmem>>, vector<256x256xbf16>
    %24 = arith.truncf %22 : vector<256x128xf32> to vector<256x128xbf16>
    %cst_9 = arith.constant dense<0.000000e+00> : vector<256x128xf32>
    %25 = tpu.matmul %23, %24, %cst_9 {dimension_numbers = #tpu.dot_dimension_numbers<[1], [0], [0], [1], [0, 0, 1, 1], [], []>} : vector<256x256xbf16>, vector<256x128xbf16>, vector<256x128xf32> -> vector<256x128xf32>
    %c0_10 = arith.constant 0 : index
    %c0_11 = arith.constant 0 : index
    %26 = vector.load %arg5[%c0_10, %c0_11] : memref<256x1xf32, #tpu.memory_space<vmem>>, vector<256x1xf32>
    %27 = vector.broadcast %26 : vector<256x1xf32> to vector<256x128xf32>
    %28 = arith.addf %25, %27 : vector<256x128xf32>
    %cst_12 = arith.constant 0.000000e+00 : f32
    %29 = vector.broadcast %cst_12 : f32 to vector<256x128xf32>
    %30 = arith.maximumf %28, %29 : vector<256x128xf32>
    %c0_13 = arith.constant 0 : index
    %c0_14 = arith.constant 0 : index
    %31 = vector.load %arg6[%c0_13, %c0_14] : memref<256x1xf32, #tpu.memory_space<vmem>>, vector<256x1xf32>
    %32 = vector.broadcast %31 : vector<256x1xf32> to vector<256x128xf32>
    %33 = arith.mulf %30, %32 : vector<256x128xf32>
    %cst_15 = arith.constant dense<0.000000e+00> : vector<128xf32>
    %34 = vector.multi_reduction <add>, %33, %cst_15 [0] : vector<256x128xf32> to vector<128xf32>
    %35 = vector.shape_cast %34 : vector<128xf32> to vector<1x128xf32>
    %c0_16 = arith.constant 0 : index
    %c0_17 = arith.constant 0 : index
    %36 = vector.load %arg7[%c0_16, %c0_17] : memref<1x1xf32, #tpu.memory_space<vmem>>, vector<1x1xf32>
    %37 = vector.broadcast %36 : vector<1x1xf32> to vector<1x128xf32>
    %38 = arith.addf %35, %37 : vector<1x128xf32>
    %39 = math.tanh %38 : vector<1x128xf32>
    %cst_18 = arith.constant 2.000000e+00 : f32
    %40 = vector.broadcast %cst_18 : f32 to vector<1x128xf32>
    %41 = arith.mulf %40, %39 : vector<1x128xf32>
    %c0_19 = arith.constant 0 : index
    %c0_20 = arith.constant 0 : index
    %42 = vector.load %arg8[%c0_19, %c0_20] : memref<1x128xf32, #tpu.memory_space<vmem>>, vector<1x128xf32>
    tpu.vector_store %arg8[%c0_19, %c0_20], %41 {strides = array<i32>} : memref<1x128xf32, #tpu.memory_space<vmem>>, vector<1x128xf32>,
    return
  }
  func.func @transform_0(%arg0: i32) -> (i32, i32) {
    %c0_i32 = arith.constant 0 : i32
    %c0_i32_0 = arith.constant 0 : i32
    return %c0_i32, %arg0 : i32, i32
  }
  func.func @transform_1(%arg0: i32) -> (i32, i32) {
    %c0_i32 = arith.constant 0 : i32
    %c0_i32_0 = arith.constant 0 : i32
    %c0_i32_1 = arith.constant 0 : i32
    return %c0_i32, %c0_i32_0 : i32, i32
  }
  func.func @transform_2(%arg0: i32) -> (i32, i32) {
    %c0_i32 = arith.constant 0 : i32
    %c0_i32_0 = arith.constant 0 : i32
    %c0_i32_1 = arith.constant 0 : i32
    return %c0_i32, %c0_i32_0 : i32, i32
  }
  func.func @transform_3(%arg0: i32) -> (i32, i32) {
    %c0_i32 = arith.constant 0 : i32
    %c0_i32_0 = arith.constant 0 : i32
    %c0_i32_1 = arith.constant 0 : i32
    return %c0_i32, %c0_i32_0 : i32, i32
  }
  func.func @transform_4(%arg0: i32) -> (i32, i32) {
    %c0_i32 = arith.constant 0 : i32
    %c0_i32_0 = arith.constant 0 : i32
    %c0_i32_1 = arith.constant 0 : i32
    return %c0_i32, %c0_i32_0 : i32, i32
  }
  func.func @transform_5(%arg0: i32) -> (i32, i32) {
    %c0_i32 = arith.constant 0 : i32
    %c0_i32_0 = arith.constant 0 : i32
    %c0_i32_1 = arith.constant 0 : i32
    return %c0_i32, %c0_i32_0 : i32, i32
  }
  func.func @transform_6(%arg0: i32) -> (i32, i32) {
    %c0_i32 = arith.constant 0 : i32
    %c0_i32_0 = arith.constant 0 : i32
    %c0_i32_1 = arith.constant 0 : i32
    return %c0_i32, %c0_i32_0 : i32, i32
  }
  func.func @transform_7(%arg0: i32) -> (i32, i32) {
    %c0_i32 = arith.constant 0 : i32
    %c0_i32_0 = arith.constant 0 : i32
    return %c0_i32, %arg0 : i32, i32
  }
}

</mosaic_0001>

<llo_original>
// kernel: tpu_custom_call.1
$region0: #{tpu_custom_call.1}
  #allocation0 [shape = 'u32[]', space=smem, size = 0x4, offset = 0x4, fixed_abs, tag = 'smem constant byte address 0x4 - core index']
  #allocation1 [shape = 'u32[72,128]{1,0:T(1,128)}', space=vmem, size = 0x9000, scoped, tag = 'internal scratch']
  #allocation2 [shape = 'f32[1,1]{1,0:T(1,128)S(1)}', space=vmem, size = 0x200, scoped, tag = 'scoped memory for tpu_custom_call.1']
  %s0 = inlined_call_operand.vmem [shape: f32[3,128], index: 0, kind: input, shape index: {}]
  %s1 = inlined_call_operand.vmem [shape: f32[256,3], index: 1, kind: input, shape index: {}]
  %s2 = inlined_call_operand.vmem [shape: f32[256,1], index: 2, kind: input, shape index: {}]
  %s3 = inlined_call_operand.vmem [shape: bf16[256,256], index: 3, kind: input, shape index: {}]
  %s4 = inlined_call_operand.vmem [shape: f32[256,1], index: 4, kind: input, shape index: {}]
  %s5 = inlined_call_operand.vmem [shape: f32[256,1], index: 5, kind: input, shape index: {}]
  %s6 = inlined_call_operand.<no memory space> [shape: f32[1,1], index: 6, kind: input, shape index: {}]
  %s7 = inlined_call_operand.hbm [shape: f32[1,128], index: 7, kind: output, shape index: {}]
  %s8 = sld [smem:[#allocation0]]
  $region38: #{tpu_custom_call.1} parent=0
    _
  %s10 = ssub.s32 1, %s8
  %s11 = scalar_select 0, %s10, %s8
  %v12 = vstv %s6
  %13 = vst [vmem:[#allocation2] sm:$0x1] %v12
  $region1: #{tpu_custom_call.1} parent=0
    #allocation3 [shape = 'u8[512]{0}', space=vmem, size = 0x400, scoped, tag = 'output window, operand 0, single buffered']
    #allocation4 [shape = 's32[1]{0}', space=sflag, size = 0x4, scoped, tag = 'scoped memory for tpu_custom_call.1']
    %14 = vsyncpa [#allocation4], 0
    // Predicated region
    $region2: #{tpu_custom_call.1} parent=1 // pred_check
      _
    $region3: #{tpu_custom_call.1} parent=1 // pred_check_branch
      %16 = sbr.rel (0) target = $region5
    $region4: #{tpu_custom_call.1} parent=1 // pred_region
      _
    $region5: #{tpu_custom_call.1} parent=1 // pred_fallthru
      _
    // Predicated region
    $region6: #{tpu_custom_call.1} parent=1 // pred_check
      _
    $region7: #{tpu_custom_call.1} parent=1 // pred_check_branch
      %18 = sbr.rel (0) target = $region9
    $region8: #{tpu_custom_call.1} parent=1 // pred_region
      _
    $region9: #{tpu_custom_call.1} parent=1 // pred_fallthru
      _
    // Predicated region
    $region10: #{tpu_custom_call.1} parent=1 // pred_check
      _
    $region11: #{tpu_custom_call.1} parent=1 // pred_check_branch
      %20 = sbr.rel (0) target = $region13
    $region12: #{tpu_custom_call.1} parent=1 // pred_region
      _
    $region13: #{tpu_custom_call.1} parent=1 // pred_fallthru
      _
    // Predicated region
    $region14: #{tpu_custom_call.1} parent=1 // pred_check
      _
    $region15: #{tpu_custom_call.1} parent=1 // pred_check_branch
      %22 = sbr.rel (0) target = $region17
    $region16: #{tpu_custom_call.1} parent=1 // pred_region
      _
    $region17: #{tpu_custom_call.1} parent=1 // pred_fallthru
      _
    // Predicated region
    $region18: #{tpu_custom_call.1} parent=1 // pred_check
      _
    $region19: #{tpu_custom_call.1} parent=1 // pred_check_branch
      %24 = sbr.rel (0) target = $region21
    $region20: #{tpu_custom_call.1} parent=1 // pred_region
      _
    $region21: #{tpu_custom_call.1} parent=1 // pred_fallthru
      _
    // Predicated region
    $region22: #{tpu_custom_call.1} parent=1 // pred_check
      _
    $region23: #{tpu_custom_call.1} parent=1 // pred_check_branch
      %26 = sbr.rel (0) target = $region25
    $region24: #{tpu_custom_call.1} parent=1 // pred_region
      _
    $region25: #{tpu_custom_call.1} parent=1 // pred_fallthru
      _
    // Predicated region
    $region26: #{tpu_custom_call.1} parent=1 // pred_check
      _
    $region27: #{tpu_custom_call.1} parent=1 // pred_check_branch
      %28 = sbr.rel (0) target = $region29
    $region28: #{tpu_custom_call.1} parent=1 // pred_region
      _
    $region29: #{tpu_custom_call.1} parent=1 // pred_fallthru
      _
    %v29 = vld [vmem:[%s0] sm:$0x7]
    %v30 = vld [vmem:[%s1] sm:$0xff]
    %v31 = vld [vmem:[%s1 + $0x8] sm:$0xff]
    %v32 = vld [vmem:[%s1 + $0x10] sm:$0xff]
    %v33 = vld [vmem:[%s1 + $0x18] sm:$0xff]
    %v34 = vld [vmem:[%s1 + $0x20] sm:$0xff]
    %v35 = vld [vmem:[%s1 + $0x28] sm:$0xff]
    %v36 = vld [vmem:[%s1 + $0x30] sm:$0xff]
    %v37 = vld [vmem:[%s1 + $0x38] sm:$0xff]
    %v38 = vld [vmem:[%s1 + $0x40] sm:$0xff]
    %v39 = vld [vmem:[%s1 + $0x48] sm:$0xff]
    %v40 = vld [vmem:[%s1 + $0x50] sm:$0xff]
    %v41 = vld [vmem:[%s1 + $0x58] sm:$0xff]
    %v42 = vld [vmem:[%s1 + $0x60] sm:$0xff]
    %v43 = vld [vmem:[%s1 + $0x68] sm:$0xff]
    %v44 = vld [vmem:[%s1 + $0x70] sm:$0xff]
    %v45 = vld [vmem:[%s1 + $0x78] sm:$0xff]
    %v46 = vld [vmem:[%s1 + $0x80] sm:$0xff]
    %v47 = vld [vmem:[%s1 + $0x88] sm:$0xff]
    %v48 = vld [vmem:[%s1 + $0x90] sm:$0xff]
    %v49 = vld [vmem:[%s1 + $0x98] sm:$0xff]
    %v50 = vld [vmem:[%s1 + $0xa0] sm:$0xff]
    %v51 = vld [vmem:[%s1 + $0xa8] sm:$0xff]
    %v52 = vld [vmem:[%s1 + $0xb0] sm:$0xff]
    %v53 = vld [vmem:[%s1 + $0xb8] sm:$0xff]
    %v54 = vld [vmem:[%s1 + $0xc0] sm:$0xff]
    %v55 = vld [vmem:[%s1 + $0xc8] sm:$0xff]
    %v56 = vld [vmem:[%s1 + $0xd0] sm:$0xff]
    %v57 = vld [vmem:[%s1 + $0xd8] sm:$0xff]
    %v58 = vld [vmem:[%s1 + $0xe0] sm:$0xff]
    %v59 = vld [vmem:[%s1 + $0xe8] sm:$0xff]
    %v60 = vld [vmem:[%s1 + $0xf0] sm:$0xff]
    %v61 = vld [vmem:[%s1 + $0xf8] sm:$0xff]
    %63 = vset.pattern.permute.xlu0 0
    %64 = vperm.xlu0 %63, %v30
    %v65 = vpop.permute.xlu0 %64
    %68 = vset.pattern.permute.xlu0 0
    %69 = vperm.xlu0 %68, %v31
    %v70 = vpop.permute.xlu0 %69
    %73 = vset.pattern.permute.xlu0 0
    %74 = vperm.xlu0 %73, %v32
    %v75 = vpop.permute.xlu0 %74
    %78 = vset.pattern.permute.xlu0 0
    %79 = vperm.xlu0 %78, %v33
    %v80 = vpop.permute.xlu0 %79
    %83 = vset.pattern.permute.xlu0 0
    %84 = vperm.xlu0 %83, %v34
    %v85 = vpop.permute.xlu0 %84
    %88 = vset.pattern.permute.xlu0 0
    %89 = vperm.xlu0 %88, %v35
    %v90 = vpop.permute.xlu0 %89
    %93 = vset.pattern.permute.xlu0 0
    %94 = vperm.xlu0 %93, %v36
    %v95 = vpop.permute.xlu0 %94
    %98 = vset.pattern.permute.xlu0 0
    %99 = vperm.xlu0 %98, %v37
    %v100 = vpop.permute.xlu0 %99
    %103 = vset.pattern.permute.xlu0 0
    %104 = vperm.xlu0 %103, %v38
    %v105 = vpop.permute.xlu0 %104
    %108 = vset.pattern.permute.xlu0 0
    %109 = vperm.xlu0 %108, %v39
    %v110 = vpop.permute.xlu0 %109
    %113 = vset.pattern.permute.xlu0 0
    %114 = vperm.xlu0 %113, %v40
    %v115 = vpop.permute.xlu0 %114
    %118 = vset.pattern.permute.xlu0 0
    %119 = vperm.xlu0 %118, %v41
    %v120 = vpop.permute.xlu0 %119
    %123 = vset.pattern.permute.xlu0 0
    %124 = vperm.xlu0 %123, %v42
    %v125 = vpop.permute.xlu0 %124
    %128 = vset.pattern.permute.xlu0 0
    %129 = vperm.xlu0 %128, %v43
    %v130 = vpop.permute.xlu0 %129
    %133 = vset.pattern.permute.xlu0 0
    %134 = vperm.xlu0 %133, %v44
    %v135 = vpop.permute.xlu0 %134
    %138 = vset.pattern.permute.xlu0 0
    %139 = vperm.xlu0 %138, %v45
    %v140 = vpop.permute.xlu0 %139
    %143 = vset.pattern.permute.xlu0 0
    %144 = vperm.xlu0 %143, %v46
    %v145 = vpop.permute.xlu0 %144
    %148 = vset.pattern.permute.xlu0 0
    %149 = vperm.xlu0 %148, %v47
    %v150 = vpop.permute.xlu0 %149
    %153 = vset.pattern.permute.xlu0 0
    %154 = vperm.xlu0 %153, %v48
    %v155 = vpop.permute.xlu0 %154
    %158 = vset.pattern.permute.xlu0 0
    %159 = vperm.xlu0 %158, %v49
    %v160 = vpop.permute.xlu0 %159
    %163 = vset.pattern.permute.xlu0 0
    %164 = vperm.xlu0 %163, %v50
    %v165 = vpop.permute.xlu0 %164
    %168 = vset.pattern.permute.xlu0 0
    %169 = vperm.xlu0 %168, %v51
    %v170 = vpop.permute.xlu0 %169
    %173 = vset.pattern.permute.xlu0 0
    %174 = vperm.xlu0 %173, %v52
    %v175 = vpop.permute.xlu0 %174
    %178 = vset.pattern.permute.xlu0 0
    %179 = vperm.xlu0 %178, %v53
    %v180 = vpop.permute.xlu0 %179
    %183 = vset.pattern.permute.xlu0 0
    %184 = vperm.xlu0 %183, %v54
    %v185 = vpop.permute.xlu0 %184
    %188 = vset.pattern.permute.xlu0 0
    %189 = vperm.xlu0 %188, %v55
    %v190 = vpop.permute.xlu0 %189
    %193 = vset.pattern.permute.xlu0 0
    %194 = vperm.xlu0 %193, %v56
    %v195 = vpop.permute.xlu0 %194
    %198 = vset.pattern.permute.xlu0 0
    %199 = vperm.xlu0 %198, %v57
    %v200 = vpop.permute.xlu0 %199
    %203 = vset.pattern.permute.xlu0 0
    %204 = vperm.xlu0 %203, %v58
    %v205 = vpop.permute.xlu0 %204
    %208 = vset.pattern.permute.xlu0 0
    %209 = vperm.xlu0 %208, %v59
    %v210 = vpop.permute.xlu0 %209
    %213 = vset.pattern.permute.xlu0 0
    %214 = vperm.xlu0 %213, %v60
    %v215 = vpop.permute.xlu0 %214
    %218 = vset.pattern.permute.xlu0 0
    %219 = vperm.xlu0 %218, %v61
    %v220 = vpop.permute.xlu0 %219
    %v222 = vperm.slane %v29, 0
    %v223 = vmul.f32 %v65, %v222
    %v224 = vmul.f32 %v70, %v222
    %v225 = vmul.f32 %v75, %v222
    %v226 = vmul.f32 %v80, %v222
    %v227 = vmul.f32 %v85, %v222
    %v228 = vmul.f32 %v90, %v222
    %v229 = vmul.f32 %v95, %v222
    %v230 = vmul.f32 %v100, %v222
    %v231 = vmul.f32 %v105, %v222
    %v232 = vmul.f32 %v110, %v222
    %v233 = vmul.f32 %v115, %v222
    %v234 = vmul.f32 %v120, %v222
    %v235 = vmul.f32 %v125, %v222
    %v236 = vmul.f32 %v130, %v222
    %v237 = vmul.f32 %v135, %v222
    %v238 = vmul.f32 %v140, %v222
    %v239 = vmul.f32 %v145, %v222
    %v240 = vmul.f32 %v150, %v222
    %v241 = vmul.f32 %v155, %v222
    %v242 = vmul.f32 %v160, %v222
    %v243 = vmul.f32 %v165, %v222
    %v244 = vmul.f32 %v170, %v222
    %v245 = vmul.f32 %v175, %v222
    %v246 = vmul.f32 %v180, %v222
    %v247 = vmul.f32 %v185, %v222
    %v248 = vmul.f32 %v190, %v222
    %v249 = vmul.f32 %v195, %v222
    %v250 = vmul.f32 %v200, %v222
    %v251 = vmul.f32 %v205, %v222
    %v252 = vmul.f32 %v210, %v222
    %v253 = vmul.f32 %v215, %v222
    %v254 = vmul.f32 %v220, %v222
    %255 = vset.pattern.permute.xlu0 1
    %256 = vperm.xlu0 %255, %v30
    %v257 = vpop.permute.xlu0 %256
    %259 = vset.pattern.permute.xlu0 1
    %260 = vperm.xlu0 %259, %v31
    %v261 = vpop.permute.xlu0 %260
    %263 = vset.pattern.permute.xlu0 1
    %264 = vperm.xlu0 %263, %v32
    %v265 = vpop.permute.xlu0 %264
    %267 = vset.pattern.permute.xlu0 1
    %268 = vperm.xlu0 %267, %v33
    %v269 = vpop.permute.xlu0 %268
    %271 = vset.pattern.permute.xlu0 1
    %272 = vperm.xlu0 %271, %v34
    %v273 = vpop.permute.xlu0 %272
    %275 = vset.pattern.permute.xlu0 1
    %276 = vperm.xlu0 %275, %v35
    %v277 = vpop.permute.xlu0 %276
    %279 = vset.pattern.permute.xlu0 1
    %280 = vperm.xlu0 %279, %v36
    %v281 = vpop.permute.xlu0 %280
    %283 = vset.pattern.permute.xlu0 1
    %284 = vperm.xlu0 %283, %v37
    %v285 = vpop.permute.xlu0 %284
    %287 = vset.pattern.permute.xlu0 1
    %288 = vperm.xlu0 %287, %v38
    %v289 = vpop.permute.xlu0 %288
    %291 = vset.pattern.permute.xlu0 1
    %292 = vperm.xlu0 %291, %v39
    %v293 = vpop.permute.xlu0 %292
    %295 = vset.pattern.permute.xlu0 1
    %296 = vperm.xlu0 %295, %v40
    %v297 = vpop.permute.xlu0 %296
    %299 = vset.pattern.permute.xlu0 1
    %300 = vperm.xlu0 %299, %v41
    %v301 = vpop.permute.xlu0 %300
    %303 = vset.pattern.permute.xlu0 1
    %304 = vperm.xlu0 %303, %v42
    %v305 = vpop.permute.xlu0 %304
    %307 = vset.pattern.permute.xlu0 1
    %308 = vperm.xlu0 %307, %v43
    %v309 = vpop.permute.xlu0 %308
    %311 = vset.pattern.permute.xlu0 1
    %312 = vperm.xlu0 %311, %v44
    %v313 = vpop.permute.xlu0 %312
    %315 = vset.pattern.permute.xlu0 1
    %316 = vperm.xlu0 %315, %v45
    %v317 = vpop.permute.xlu0 %316
    %319 = vset.pattern.permute.xlu0 1
    %320 = vperm.xlu0 %319, %v46
    %v321 = vpop.permute.xlu0 %320
    %323 = vset.pattern.permute.xlu0 1
    %324 = vperm.xlu0 %323, %v47
    %v325 = vpop.permute.xlu0 %324
    %327 = vset.pattern.permute.xlu0 1
    %328 = vperm.xlu0 %327, %v48
    %v329 = vpop.permute.xlu0 %328
    %331 = vset.pattern.permute.xlu0 1
    %332 = vperm.xlu0 %331, %v49
    %v333 = vpop.permute.xlu0 %332
    %335 = vset.pattern.permute.xlu0 1
    %336 = vperm.xlu0 %335, %v50
    %v337 = vpop.permute.xlu0 %336
    %339 = vset.pattern.permute.xlu0 1
    %340 = vperm.xlu0 %339, %v51
    %v341 = vpop.permute.xlu0 %340
    %343 = vset.pattern.permute.xlu0 1
    %344 = vperm.xlu0 %343, %v52
    %v345 = vpop.permute.xlu0 %344
    %347 = vset.pattern.permute.xlu0 1
    %348 = vperm.xlu0 %347, %v53
    %v349 = vpop.permute.xlu0 %348
    %351 = vset.pattern.permute.xlu0 1
    %352 = vperm.xlu0 %351, %v54
    %v353 = vpop.permute.xlu0 %352
    %355 = vset.pattern.permute.xlu0 1
    %356 = vperm.xlu0 %355, %v55
    %v357 = vpop.permute.xlu0 %356
    %359 = vset.pattern.permute.xlu0 1
    %360 = vperm.xlu0 %359, %v56
    %v361 = vpop.permute.xlu0 %360
    %363 = vset.pattern.permute.xlu0 1
    %364 = vperm.xlu0 %363, %v57
    %v365 = vpop.permute.xlu0 %364
    %367 = vset.pattern.permute.xlu0 1
    %368 = vperm.xlu0 %367, %v58
    %v369 = vpop.permute.xlu0 %368
    %371 = vset.pattern.permute.xlu0 1
    %372 = vperm.xlu0 %371, %v59
    %v373 = vpop.permute.xlu0 %372
    %375 = vset.pattern.permute.xlu0 1
    %376 = vperm.xlu0 %375, %v60
    %v377 = vpop.permute.xlu0 %376
    %379 = vset.pattern.permute.xlu0 1
    %380 = vperm.xlu0 %379, %v61
    %v381 = vpop.permute.xlu0 %380
    %v383 = vperm.slane %v29, 1
    %v384 = vmul.f32 %v257, %v383
    %v385 = vmul.f32 %v261, %v383
    %v386 = vmul.f32 %v265, %v383
    %v387 = vmul.f32 %v269, %v383
    %v388 = vmul.f32 %v273, %v383
    %v389 = vmul.f32 %v277, %v383
    %v390 = vmul.f32 %v281, %v383
    %v391 = vmul.f32 %v285, %v383
    %v392 = vmul.f32 %v289, %v383
    %v393 = vmul.f32 %v293, %v383
    %v394 = vmul.f32 %v297, %v383
    %v395 = vmul.f32 %v301, %v383
    %v396 = vmul.f32 %v305, %v383
    %v397 = vmul.f32 %v309, %v383
    %v398 = vmul.f32 %v313, %v383
    %v399 = vmul.f32 %v317, %v383
    %v400 = vmul.f32 %v321, %v383
    %v401 = vmul.f32 %v325, %v383
    %v402 = vmul.f32 %v329, %v383
    %v403 = vmul.f32 %v333, %v383
    %v404 = vmul.f32 %v337, %v383
    %v405 = vmul.f32 %v341, %v383
    %v406 = vmul.f32 %v345, %v383
    %v407 = vmul.f32 %v349, %v383
    %v408 = vmul.f32 %v353, %v383
    %v409 = vmul.f32 %v357, %v383
    %v410 = vmul.f32 %v361, %v383
    %v411 = vmul.f32 %v365, %v383
    %v412 = vmul.f32 %v369, %v383
    %v413 = vmul.f32 %v373, %v383
    %v414 = vmul.f32 %v377, %v383
    %v415 = vmul.f32 %v381, %v383
    %v416 = vadd.f32 %v223, %v384
    %v417 = vadd.f32 %v224, %v385
    %v418 = vadd.f32 %v225, %v386
    %v419 = vadd.f32 %v226, %v387
    %v420 = vadd.f32 %v227, %v388
    %v421 = vadd.f32 %v228, %v389
    %v422 = vadd.f32 %v229, %v390
    %v423 = vadd.f32 %v230, %v391
    %v424 = vadd.f32 %v231, %v392
    %v425 = vadd.f32 %v232, %v393
    %v426 = vadd.f32 %v233, %v394
    %v427 = vadd.f32 %v234, %v395
    %v428 = vadd.f32 %v235, %v396
    %v429 = vadd.f32 %v236, %v397
    %v430 = vadd.f32 %v237, %v398
    %v431 = vadd.f32 %v238, %v399
    %v432 = vadd.f32 %v239, %v400
    %v433 = vadd.f32 %v240, %v401
    %v434 = vadd.f32 %v241, %v402
    %v435 = vadd.f32 %v242, %v403
    %v436 = vadd.f32 %v243, %v404
    %v437 = vadd.f32 %v244, %v405
    %v438 = vadd.f32 %v245, %v406
    %v439 = vadd.f32 %v246, %v407
    %v440 = vadd.f32 %v247, %v408
    %v441 = vadd.f32 %v248, %v409
    %v442 = vadd.f32 %v249, %v410
    %v443 = vadd.f32 %v250, %v411
    %v444 = vadd.f32 %v251, %v412
    %v445 = vadd.f32 %v252, %v413
    %v446 = vadd.f32 %v253, %v414
    %v447 = vadd.f32 %v254, %v415
    %448 = vset.pattern.permute.xlu0 2
    %449 = vperm.xlu0 %448, %v30
    %v450 = vpop.permute.xlu0 %449
    %452 = vset.pattern.permute.xlu0 2
    %453 = vperm.xlu0 %452, %v31
    %v454 = vpop.permute.xlu0 %453
    %456 = vset.pattern.permute.xlu0 2
    %457 = vperm.xlu0 %456, %v32
    %v458 = vpop.permute.xlu0 %457
    %460 = vset.pattern.permute.xlu0 2
    %461 = vperm.xlu0 %460, %v33
    %v462 = vpop.permute.xlu0 %461
    %464 = vset.pattern.permute.xlu0 2
    %465 = vperm.xlu0 %464, %v34
    %v466 = vpop.permute.xlu0 %465
    %468 = vset.pattern.permute.xlu0 2
    %469 = vperm.xlu0 %468, %v35
    %v470 = vpop.permute.xlu0 %469
    %472 = vset.pattern.permute.xlu0 2
    %473 = vperm.xlu0 %472, %v36
    %v474 = vpop.permute.xlu0 %473
    %476 = vset.pattern.permute.xlu0 2
    %477 = vperm.xlu0 %476, %v37
    %v478 = vpop.permute.xlu0 %477
    %480 = vset.pattern.permute.xlu0 2
    %481 = vperm.xlu0 %480, %v38
    %v482 = vpop.permute.xlu0 %481
    %484 = vset.pattern.permute.xlu0 2
    %485 = vperm.xlu0 %484, %v39
    %v486 = vpop.permute.xlu0 %485
    %488 = vset.pattern.permute.xlu0 2
    %489 = vperm.xlu0 %488, %v40
    %v490 = vpop.permute.xlu0 %489
    %492 = vset.pattern.permute.xlu0 2
    %493 = vperm.xlu0 %492, %v41
    %v494 = vpop.permute.xlu0 %493
    %496 = vset.pattern.permute.xlu0 2
    %497 = vperm.xlu0 %496, %v42
    %v498 = vpop.permute.xlu0 %497
    %500 = vset.pattern.permute.xlu0 2
    %501 = vperm.xlu0 %500, %v43
    %v502 = vpop.permute.xlu0 %501
    %504 = vset.pattern.permute.xlu0 2
    %505 = vperm.xlu0 %504, %v44
    %v506 = vpop.permute.xlu0 %505
    %508 = vset.pattern.permute.xlu0 2
    %509 = vperm.xlu0 %508, %v45
    %v510 = vpop.permute.xlu0 %509
    %512 = vset.pattern.permute.xlu0 2
    %513 = vperm.xlu0 %512, %v46
    %v514 = vpop.permute.xlu0 %513
    %516 = vset.pattern.permute.xlu0 2
    %517 = vperm.xlu0 %516, %v47
    %v518 = vpop.permute.xlu0 %517
    %520 = vset.pattern.permute.xlu0 2
    %521 = vperm.xlu0 %520, %v48
    %v522 = vpop.permute.xlu0 %521
    %524 = vset.pattern.permute.xlu0 2
    %525 = vperm.xlu0 %524, %v49
    %v526 = vpop.permute.xlu0 %525
    %528 = vset.pattern.permute.xlu0 2
    %529 = vperm.xlu0 %528, %v50
    %v530 = vpop.permute.xlu0 %529
    %532 = vset.pattern.permute.xlu0 2
    %533 = vperm.xlu0 %532, %v51
    %v534 = vpop.permute.xlu0 %533
    %536 = vset.pattern.permute.xlu0 2
    %537 = vperm.xlu0 %536, %v52
    %v538 = vpop.permute.xlu0 %537
    %540 = vset.pattern.permute.xlu0 2
    %541 = vperm.xlu0 %540, %v53
    %v542 = vpop.permute.xlu0 %541
    %544 = vset.pattern.permute.xlu0 2
    %545 = vperm.xlu0 %544, %v54
    %v546 = vpop.permute.xlu0 %545
    %548 = vset.pattern.permute.xlu0 2
    %549 = vperm.xlu0 %548, %v55
    %v550 = vpop.permute.xlu0 %549
    %552 = vset.pattern.permute.xlu0 2
    %553 = vperm.xlu0 %552, %v56
    %v554 = vpop.permute.xlu0 %553
    %556 = vset.pattern.permute.xlu0 2
    %557 = vperm.xlu0 %556, %v57
    %v558 = vpop.permute.xlu0 %557
    %560 = vset.pattern.permute.xlu0 2
    %561 = vperm.xlu0 %560, %v58
    %v562 = vpop.permute.xlu0 %561
    %564 = vset.pattern.permute.xlu0 2
    %565 = vperm.xlu0 %564, %v59
    %v566 = vpop.permute.xlu0 %565
    %568 = vset.pattern.permute.xlu0 2
    %569 = vperm.xlu0 %568, %v60
    %v570 = vpop.permute.xlu0 %569
    %572 = vset.pattern.permute.xlu0 2
    %573 = vperm.xlu0 %572, %v61
    %v574 = vpop.permute.xlu0 %573
    %v576 = vperm.slane %v29, 2
    %v577 = vmul.f32 %v450, %v576
    %v578 = vmul.f32 %v454, %v576
    %v579 = vmul.f32 %v458, %v576
    %v580 = vmul.f32 %v462, %v576
    %v581 = vmul.f32 %v466, %v576
    %v582 = vmul.f32 %v470, %v576
    %v583 = vmul.f32 %v474, %v576
    %v584 = vmul.f32 %v478, %v576
    %v585 = vmul.f32 %v482, %v576
    %v586 = vmul.f32 %v486, %v576
    %v587 = vmul.f32 %v490, %v576
    %v588 = vmul.f32 %v494, %v576
    %v589 = vmul.f32 %v498, %v576
    %v590 = vmul.f32 %v502, %v576
    %v591 = vmul.f32 %v506, %v576
    %v592 = vmul.f32 %v510, %v576
    %v593 = vmul.f32 %v514, %v576
    %v594 = vmul.f32 %v518, %v576
    %v595 = vmul.f32 %v522, %v576
    %v596 = vmul.f32 %v526, %v576
    %v597 = vmul.f32 %v530, %v576
    %v598 = vmul.f32 %v534, %v576
    %v599 = vmul.f32 %v538, %v576
    %v600 = vmul.f32 %v542, %v576
    %v601 = vmul.f32 %v546, %v576
    %v602 = vmul.f32 %v550, %v576
    %v603 = vmul.f32 %v554, %v576
    %v604 = vmul.f32 %v558, %v576
    %v605 = vmul.f32 %v562, %v576
    %v606 = vmul.f32 %v566, %v576
    %v607 = vmul.f32 %v570, %v576
    %v608 = vmul.f32 %v574, %v576
    %v609 = vadd.f32 %v416, %v577
    %v610 = vadd.f32 %v417, %v578
    %v611 = vadd.f32 %v418, %v579
    %v612 = vadd.f32 %v419, %v580
    %v613 = vadd.f32 %v420, %v581
    %v614 = vadd.f32 %v421, %v582
    %v615 = vadd.f32 %v422, %v583
    %v616 = vadd.f32 %v423, %v584
    %v617 = vadd.f32 %v424, %v585
    %v618 = vadd.f32 %v425, %v586
    %v619 = vadd.f32 %v426, %v587
    %v620 = vadd.f32 %v427, %v588
    %v621 = vadd.f32 %v428, %v589
    %v622 = vadd.f32 %v429, %v590
    %v623 = vadd.f32 %v430, %v591
    %v624 = vadd.f32 %v431, %v592
    %v625 = vadd.f32 %v432, %v593
    %v626 = vadd.f32 %v433, %v594
    %v627 = vadd.f32 %v434, %v595
    %v628 = vadd.f32 %v435, %v596
    %v629 = vadd.f32 %v436, %v597
    %v630 = vadd.f32 %v437, %v598
    %v631 = vadd.f32 %v438, %v599
    %v632 = vadd.f32 %v439, %v600
    %v633 = vadd.f32 %v440, %v601
    %v634 = vadd.f32 %v441, %v602
    %v635 = vadd.f32 %v442, %v603
    %v636 = vadd.f32 %v443, %v604
    %v637 = vadd.f32 %v444, %v605
    %v638 = vadd.f32 %v445, %v606
    %v639 = vadd.f32 %v446, %v607
    %v640 = vadd.f32 %v447, %v608
    %v641 = vld [vmem:[%s2] sm:$0xff]
    %v642 = vld [vmem:[%s2 + $0x8] sm:$0xff]
    %v643 = vld [vmem:[%s2 + $0x10] sm:$0xff]
    %v644 = vld [vmem:[%s2 + $0x18] sm:$0xff]
    %v645 = vld [vmem:[%s2 + $0x20] sm:$0xff]
    %v646 = vld [vmem:[%s2 + $0x28] sm:$0xff]
    %v647 = vld [vmem:[%s2 + $0x30] sm:$0xff]
    %v648 = vld [vmem:[%s2 + $0x38] sm:$0xff]
    %v649 = vld [vmem:[%s2 + $0x40] sm:$0xff]
    %v650 = vld [vmem:[%s2 + $0x48] sm:$0xff]
    %v651 = vld [vmem:[%s2 + $0x50] sm:$0xff]
    %v652 = vld [vmem:[%s2 + $0x58] sm:$0xff]
    %v653 = vld [vmem:[%s2 + $0x60] sm:$0xff]
    %v654 = vld [vmem:[%s2 + $0x68] sm:$0xff]
    %v655 = vld [vmem:[%s2 + $0x70] sm:$0xff]
    %v656 = vld [vmem:[%s2 + $0x78] sm:$0xff]
    %v657 = vld [vmem:[%s2 + $0x80] sm:$0xff]
    %v658 = vld [vmem:[%s2 + $0x88] sm:$0xff]
    %v659 = vld [vmem:[%s2 + $0x90] sm:$0xff]
    %v660 = vld [vmem:[%s2 + $0x98] sm:$0xff]
    %v661 = vld [vmem:[%s2 + $0xa0] sm:$0xff]
    %v662 = vld [vmem:[%s2 + $0xa8] sm:$0xff]
    %v663 = vld [vmem:[%s2 + $0xb0] sm:$0xff]
    %v664 = vld [vmem:[%s2 + $0xb8] sm:$0xff]
    %v665 = vld [vmem:[%s2 + $0xc0] sm:$0xff]
    %v666 = vld [vmem:[%s2 + $0xc8] sm:$0xff]
    %v667 = vld [vmem:[%s2 + $0xd0] sm:$0xff]
    %v668 = vld [vmem:[%s2 + $0xd8] sm:$0xff]
    %v669 = vld [vmem:[%s2 + $0xe0] sm:$0xff]
    %v670 = vld [vmem:[%s2 + $0xe8] sm:$0xff]
    %v671 = vld [vmem:[%s2 + $0xf0] sm:$0xff]
    %v672 = vld [vmem:[%s2 + $0xf8] sm:$0xff]
    %674 = vset.pattern.permute.xlu0 0
    %675 = vperm.xlu0 %674, %v641
    %v676 = vpop.permute.xlu0 %675
    %679 = vset.pattern.permute.xlu0 0
    %680 = vperm.xlu0 %679, %v642
    %v681 = vpop.permute.xlu0 %680
    %684 = vset.pattern.permute.xlu0 0
    %685 = vperm.xlu0 %684, %v643
    %v686 = vpop.permute.xlu0 %685
    %689 = vset.pattern.permute.xlu0 0
    %690 = vperm.xlu0 %689, %v644
    %v691 = vpop.permute.xlu0 %690
    %694 = vset.pattern.permute.xlu0 0
    %695 = vperm.xlu0 %694, %v645
    %v696 = vpop.permute.xlu0 %695
    %699 = vset.pattern.permute.xlu0 0
    %700 = vperm.xlu0 %699, %v646
    %v701 = vpop.permute.xlu0 %700
    %704 = vset.pattern.permute.xlu0 0
    %705 = vperm.xlu0 %704, %v647
    %v706 = vpop.permute.xlu0 %705
    %709 = vset.pattern.permute.xlu0 0
    %710 = vperm.xlu0 %709, %v648
    %v711 = vpop.permute.xlu0 %710
    %714 = vset.pattern.permute.xlu0 0
    %715 = vperm.xlu0 %714, %v649
    %v716 = vpop.permute.xlu0 %715
    %719 = vset.pattern.permute.xlu0 0
    %720 = vperm.xlu0 %719, %v650
    %v721 = vpop.permute.xlu0 %720
    %724 = vset.pattern.permute.xlu0 0
    %725 = vperm.xlu0 %724, %v651
    %v726 = vpop.permute.xlu0 %725
    %729 = vset.pattern.permute.xlu0 0
    %730 = vperm.xlu0 %729, %v652
    %v731 = vpop.permute.xlu0 %730
    %734 = vset.pattern.permute.xlu0 0
    %735 = vperm.xlu0 %734, %v653
    %v736 = vpop.permute.xlu0 %735
    %739 = vset.pattern.permute.xlu0 0
    %740 = vperm.xlu0 %739, %v654
    %v741 = vpop.permute.xlu0 %740
    %744 = vset.pattern.permute.xlu0 0
    %745 = vperm.xlu0 %744, %v655
    %v746 = vpop.permute.xlu0 %745
    %749 = vset.pattern.permute.xlu0 0
    %750 = vperm.xlu0 %749, %v656
    %v751 = vpop.permute.xlu0 %750
    %754 = vset.pattern.permute.xlu0 0
    %755 = vperm.xlu0 %754, %v657
    %v756 = vpop.permute.xlu0 %755
    %759 = vset.pattern.permute.xlu0 0
    %760 = vperm.xlu0 %759, %v658
    %v761 = vpop.permute.xlu0 %760
    %764 = vset.pattern.permute.xlu0 0
    %765 = vperm.xlu0 %764, %v659
    %v766 = vpop.permute.xlu0 %765
    %769 = vset.pattern.permute.xlu0 0
    %770 = vperm.xlu0 %769, %v660
    %v771 = vpop.permute.xlu0 %770
    %774 = vset.pattern.permute.xlu0 0
    %775 = vperm.xlu0 %774, %v661
    %v776 = vpop.permute.xlu0 %775
    %779 = vset.pattern.permute.xlu0 0
    %780 = vperm.xlu0 %779, %v662
    %v781 = vpop.permute.xlu0 %780
    %784 = vset.pattern.permute.xlu0 0
    %785 = vperm.xlu0 %784, %v663
    %v786 = vpop.permute.xlu0 %785
    %789 = vset.pattern.permute.xlu0 0
    %790 = vperm.xlu0 %789, %v664
    %v791 = vpop.permute.xlu0 %790
    %794 = vset.pattern.permute.xlu0 0
    %795 = vperm.xlu0 %794, %v665
    %v796 = vpop.permute.xlu0 %795
    %799 = vset.pattern.permute.xlu0 0
    %800 = vperm.xlu0 %799, %v666
    %v801 = vpop.permute.xlu0 %800
    %804 = vset.pattern.permute.xlu0 0
    %805 = vperm.xlu0 %804, %v667
    %v806 = vpop.permute.xlu0 %805
    %809 = vset.pattern.permute.xlu0 0
    %810 = vperm.xlu0 %809, %v668
    %v811 = vpop.permute.xlu0 %810
    %814 = vset.pattern.permute.xlu0 0
    %815 = vperm.xlu0 %814, %v669
    %v816 = vpop.permute.xlu0 %815
    %819 = vset.pattern.permute.xlu0 0
    %820 = vperm.xlu0 %819, %v670
    %v821 = vpop.permute.xlu0 %820
    %824 = vset.pattern.permute.xlu0 0
    %825 = vperm.xlu0 %824, %v671
    %v826 = vpop.permute.xlu0 %825
    %829 = vset.pattern.permute.xlu0 0
    %830 = vperm.xlu0 %829, %v672
    %v831 = vpop.permute.xlu0 %830
    %v833 = vadd.f32 %v609, %v676
    %v834 = vadd.f32 %v610, %v681
    %v835 = vadd.f32 %v611, %v686
    %v836 = vadd.f32 %v612, %v691
    %v837 = vadd.f32 %v613, %v696
    %v838 = vadd.f32 %v614, %v701
    %v839 = vadd.f32 %v615, %v706
    %v840 = vadd.f32 %v616, %v711
    %v841 = vadd.f32 %v617, %v716
    %v842 = vadd.f32 %v618, %v721
    %v843 = vadd.f32 %v619, %v726
    %v844 = vadd.f32 %v620, %v731
    %v845 = vadd.f32 %v621, %v736
    %v846 = vadd.f32 %v622, %v741
    %v847 = vadd.f32 %v623, %v746
    %v848 = vadd.f32 %v624, %v751
    %v849 = vadd.f32 %v625, %v756
    %v850 = vadd.f32 %v626, %v761
    %v851 = vadd.f32 %v627, %v766
    %v852 = vadd.f32 %v628, %v771
    %v853 = vadd.f32 %v629, %v776
    %v854 = vadd.f32 %v630, %v781
    %v855 = vadd.f32 %v631, %v786
    %v856 = vadd.f32 %v632, %v791
    %v857 = vadd.f32 %v633, %v796
    %v858 = vadd.f32 %v634, %v801
    %v859 = vadd.f32 %v635, %v806
    %v860 = vadd.f32 %v636, %v811
    %v861 = vadd.f32 %v637, %v816
    %v862 = vadd.f32 %v638, %v821
    %v863 = vadd.f32 %v639, %v826
    %v864 = vadd.f32 %v640, %v831
    %v865 = vmax.f32 %v833, 0.0
    %v866 = vmax.f32 %v834, 0.0
    %v867 = vmax.f32 %v835, 0.0
    %v868 = vmax.f32 %v836, 0.0
    %v869 = vmax.f32 %v837, 0.0
    %v870 = vmax.f32 %v838, 0.0
    %v871 = vmax.f32 %v839, 0.0
    %v872 = vmax.f32 %v840, 0.0
    %v873 = vmax.f32 %v841, 0.0
    %v874 = vmax.f32 %v842, 0.0
    %v875 = vmax.f32 %v843, 0.0
    %v876 = vmax.f32 %v844, 0.0
    %v877 = vmax.f32 %v845, 0.0
    %v878 = vmax.f32 %v846, 0.0
    %v879 = vmax.f32 %v847, 0.0
    %v880 = vmax.f32 %v848, 0.0
    %v881 = vmax.f32 %v849, 0.0
    %v882 = vmax.f32 %v850, 0.0
    %v883 = vmax.f32 %v851, 0.0
    %v884 = vmax.f32 %v852, 0.0
    %v885 = vmax.f32 %v853, 0.0
    %v886 = vmax.f32 %v854, 0.0
    %v887 = vmax.f32 %v855, 0.0
    %v888 = vmax.f32 %v856, 0.0
    %v889 = vmax.f32 %v857, 0.0
    %v890 = vmax.f32 %v858, 0.0
    %v891 = vmax.f32 %v859, 0.0
    %v892 = vmax.f32 %v860, 0.0
    %v893 = vmax.f32 %v861, 0.0
    %v894 = vmax.f32 %v862, 0.0
    %v895 = vmax.f32 %v863, 0.0
    %v896 = vmax.f32 %v864, 0.0
    %v897 = vld [vmem:[%s3] sm:$0xff]
    %v898 = vld [vmem:[%s3 + $0x8] sm:$0xff]
    %v899 = vld [vmem:[%s3 + $0x10] sm:$0xff]
    %v900 = vld [vmem:[%s3 + $0x18] sm:$0xff]
    %v901 = vld [vmem:[%s3 + $0x20] sm:$0xff]
    %v902 = vld [vmem:[%s3 + $0x28] sm:$0xff]
    %v903 = vld [vmem:[%s3 + $0x30] sm:$0xff]
    %v904 = vld [vmem:[%s3 + $0x38] sm:$0xff]
    %v905 = vld [vmem:[%s3 + $0x40] sm:$0xff]
    %v906 = vld [vmem:[%s3 + $0x48] sm:$0xff]
    %v907 = vld [vmem:[%s3 + $0x50] sm:$0xff]
    %v908 = vld [vmem:[%s3 + $0x58] sm:$0xff]
    %v909 = vld [vmem:[%s3 + $0x60] sm:$0xff]
    %v910 = vld [vmem:[%s3 + $0x68] sm:$0xff]
    %v911 = vld [vmem:[%s3 + $0x70] sm:$0xff]
    %v912 = vld [vmem:[%s3 + $0x78] sm:$0xff]
    %v913 = vld [vmem:[%s3 + $0x80] sm:$0xff]
    %v914 = vld [vmem:[%s3 + $0x88] sm:$0xff]
    %v915 = vld [vmem:[%s3 + $0x90] sm:$0xff]
    %v916 = vld [vmem:[%s3 + $0x98] sm:$0xff]
    %v917 = vld [vmem:[%s3 + $0xa0] sm:$0xff]
    %v918 = vld [vmem:[%s3 + $0xa8] sm:$0xff]
    %v919 = vld [vmem:[%s3 + $0xb0] sm:$0xff]
    %v920 = vld [vmem:[%s3 + $0xb8] sm:$0xff]
    %v921 = vld [vmem:[%s3 + $0xc0] sm:$0xff]
    %v922 = vld [vmem:[%s3 + $0xc8] sm:$0xff]
    %v923 = vld [vmem:[%s3 + $0xd0] sm:$0xff]
    %v924 = vld [vmem:[%s3 + $0xd8] sm:$0xff]
    %v925 = vld [vmem:[%s3 + $0xe0] sm:$0xff]
    %v926 = vld [vmem:[%s3 + $0xe8] sm:$0xff]
    %v927 = vld [vmem:[%s3 + $0xf0] sm:$0xff]
    %v928 = vld [vmem:[%s3 + $0xf8] sm:$0xff]
    %v929 = vpack.c.bf16 %v866, %v865
    %v930 = vpack.c.bf16 %v868, %v867
    %v931 = vpack.c.bf16 %v870, %v869
    %v932 = vpack.c.bf16 %v872, %v871
    %v933 = vpack.c.bf16 %v874, %v873
    %v934 = vpack.c.bf16 %v876, %v875
    %v935 = vpack.c.bf16 %v878, %v877
    %v936 = vpack.c.bf16 %v880, %v879
    %v937 = vpack.c.bf16 %v882, %v881
    %v938 = vpack.c.bf16 %v884, %v883
    %v939 = vpack.c.bf16 %v886, %v885
    %v940 = vpack.c.bf16 %v888, %v887
    %v941 = vpack.c.bf16 %v890, %v889
    %v942 = vpack.c.bf16 %v892, %v891
    %v943 = vpack.c.bf16 %v894, %v893
    %v944 = vpack.c.bf16 %v896, %v895
    %v945 = vld [vmem:[%s4] sm:$0xff]
    %v946 = vld [vmem:[%s4 + $0x8] sm:$0xff]
    %v947 = vld [vmem:[%s4 + $0x10] sm:$0xff]
    %v948 = vld [vmem:[%s4 + $0x18] sm:$0xff]
    %v949 = vld [vmem:[%s4 + $0x20] sm:$0xff]
    %v950 = vld [vmem:[%s4 + $0x28] sm:$0xff]
    %v951 = vld [vmem:[%s4 + $0x30] sm:$0xff]
    %v952 = vld [vmem:[%s4 + $0x38] sm:$0xff]
    %v953 = vld [vmem:[%s4 + $0x40] sm:$0xff]
    %v954 = vld [vmem:[%s4 + $0x48] sm:$0xff]
    %v955 = vld [vmem:[%s4 + $0x50] sm:$0xff]
    %v956 = vld [vmem:[%s4 + $0x58] sm:$0xff]
    %v957 = vld [vmem:[%s4 + $0x60] sm:$0xff]
    %v958 = vld [vmem:[%s4 + $0x68] sm:$0xff]
    %v959 = vld [vmem:[%s4 + $0x70] sm:$0xff]
    %v960 = vld [vmem:[%s4 + $0x78] sm:$0xff]
    %v961 = vld [vmem:[%s4 + $0x80] sm:$0xff]
    %v962 = vld [vmem:[%s4 + $0x88] sm:$0xff]
    %v963 = vld [vmem:[%s4 + $0x90] sm:$0xff]
    %v964 = vld [vmem:[%s4 + $0x98] sm:$0xff]
    %v965 = vld [vmem:[%s4 + $0xa0] sm:$0xff]
    %v966 = vld [vmem:[%s4 + $0xa8] sm:$0xff]
    %v967 = vld [vmem:[%s4 + $0xb0] sm:$0xff]
    %v968 = vld [vmem:[%s4 + $0xb8] sm:$0xff]
    %v969 = vld [vmem:[%s4 + $0xc0] sm:$0xff]
    %v970 = vld [vmem:[%s4 + $0xc8] sm:$0xff]
    %v971 = vld [vmem:[%s4 + $0xd0] sm:$0xff]
    %v972 = vld [vmem:[%s4 + $0xd8] sm:$0xff]
    %v973 = vld [vmem:[%s4 + $0xe0] sm:$0xff]
    %v974 = vld [vmem:[%s4 + $0xe8] sm:$0xff]
    %v975 = vld [vmem:[%s4 + $0xf0] sm:$0xff]
    %v976 = vld [vmem:[%s4 + $0xf8] sm:$0xff]
    %978 = vset.pattern.permute.xlu0 0
    %979 = vperm.xlu0 %978, %v945
    %v980 = vpop.permute.xlu0 %979
    %983 = vset.pattern.permute.xlu0 0
    %984 = vperm.xlu0 %983, %v946
    %v985 = vpop.permute.xlu0 %984
    %988 = vset.pattern.permute.xlu0 0
    %989 = vperm.xlu0 %988, %v947
    %v990 = vpop.permute.xlu0 %989
    %993 = vset.pattern.permute.xlu0 0
    %994 = vperm.xlu0 %993, %v948
    %v995 = vpop.permute.xlu0 %994
    %998 = vset.pattern.permute.xlu0 0
    %999 = vperm.xlu0 %998, %v949
    %v1000 = vpop.permute.xlu0 %999
    %1003 = vset.pattern.permute.xlu0 0
    %1004 = vperm.xlu0 %1003, %v950
    %v1005 = vpop.permute.xlu0 %1004
    %1008 = vset.pattern.permute.xlu0 0
    %1009 = vperm.xlu0 %1008, %v951
    %v1010 = vpop.permute.xlu0 %1009
    %1013 = vset.pattern.permute.xlu0 0
    %1014 = vperm.xlu0 %1013, %v952
    %v1015 = vpop.permute.xlu0 %1014
    %1018 = vset.pattern.permute.xlu0 0
    %1019 = vperm.xlu0 %1018, %v953
    %v1020 = vpop.permute.xlu0 %1019
    %1023 = vset.pattern.permute.xlu0 0
    %1024 = vperm.xlu0 %1023, %v954
    %v1025 = vpop.permute.xlu0 %1024
    %1028 = vset.pattern.permute.xlu0 0
    %1029 = vperm.xlu0 %1028, %v955
    %v1030 = vpop.permute.xlu0 %1029
    %1033 = vset.pattern.permute.xlu0 0
    %1034 = vperm.xlu0 %1033, %v956
    %v1035 = vpop.permute.xlu0 %1034
    %1038 = vset.pattern.permute.xlu0 0
    %1039 = vperm.xlu0 %1038, %v957
    %v1040 = vpop.permute.xlu0 %1039
    %1043 = vset.pattern.permute.xlu0 0
    %1044 = vperm.xlu0 %1043, %v958
    %v1045 = vpop.permute.xlu0 %1044
    %1048 = vset.pattern.permute.xlu0 0
    %1049 = vperm.xlu0 %1048, %v959
    %v1050 = vpop.permute.xlu0 %1049
    %1053 = vset.pattern.permute.xlu0 0
    %1054 = vperm.xlu0 %1053, %v960
    %v1055 = vpop.permute.xlu0 %1054
    %1058 = vset.pattern.permute.xlu0 0
    %1059 = vperm.xlu0 %1058, %v961
    %v1060 = vpop.permute.xlu0 %1059
    %1063 = vset.pattern.permute.xlu0 0
    %1064 = vperm.xlu0 %1063, %v962
    %v1065 = vpop.permute.xlu0 %1064
    %1068 = vset.pattern.permute.xlu0 0
    %1069 = vperm.xlu0 %1068, %v963
    %v1070 = vpop.permute.xlu0 %1069
    %1073 = vset.pattern.permute.xlu0 0
    %1074 = vperm.xlu0 %1073, %v964
    %v1075 = vpop.permute.xlu0 %1074
    %1078 = vset.pattern.permute.xlu0 0
    %1079 = vperm.xlu0 %1078, %v965
    %v1080 = vpop.permute.xlu0 %1079
    %1083 = vset.pattern.permute.xlu0 0
    %1084 = vperm.xlu0 %1083, %v966
    %v1085 = vpop.permute.xlu0 %1084
    %1088 = vset.pattern.permute.xlu0 0
    %1089 = vperm.xlu0 %1088, %v967
    %v1090 = vpop.permute.xlu0 %1089
    %1093 = vset.pattern.permute.xlu0 0
    %1094 = vperm.xlu0 %1093, %v968
    %v1095 = vpop.permute.xlu0 %1094
    %1098 = vset.pattern.permute.xlu0 0
    %1099 = vperm.xlu0 %1098, %v969
    %v1100 = vpop.permute.xlu0 %1099
    %1103 = vset.pattern.permute.xlu0 0
    %1104 = vperm.xlu0 %1103, %v970
    %v1105 = vpop.permute.xlu0 %1104
    %1108 = vset.pattern.permute.xlu0 0
    %1109 = vperm.xlu0 %1108, %v971
    %v1110 = vpop.permute.xlu0 %1109
    %1113 = vset.pattern.permute.xlu0 0
    %1114 = vperm.xlu0 %1113, %v972
    %v1115 = vpop.permute.xlu0 %1114
    %1118 = vset.pattern.permute.xlu0 0
    %1119 = vperm.xlu0 %1118, %v973
    %v1120 = vpop.permute.xlu0 %1119
    %1123 = vset.pattern.permute.xlu0 0
    %1124 = vperm.xlu0 %1123, %v974
    %v1125 = vpop.permute.xlu0 %1124
    %1128 = vset.pattern.permute.xlu0 0
    %1129 = vperm.xlu0 %1128, %v975
    %v1130 = vpop.permute.xlu0 %1129
    %1133 = vset.pattern.permute.xlu0 0
    %1134 = vperm.xlu0 %1133, %v976
    %v1135 = vpop.permute.xlu0 %1134
    %v1169 = vunpack.c.l.b16 %v897
    %v1170 = vunpack.c.h.b16 %v897
    %v1171 = vunpack.c.l.b16 %v898
    %v1172 = vunpack.c.h.b16 %v898
    %v1173 = vunpack.c.l.b16 %v899
    %v1174 = vunpack.c.h.b16 %v899
    %v1175 = vunpack.c.l.b16 %v900
    %v1176 = vunpack.c.h.b16 %v900
    %v1177 = vunpack.c.l.b16 %v901
    %v1178 = vunpack.c.h.b16 %v901
    %v1179 = vunpack.c.l.b16 %v902
    %v1180 = vunpack.c.h.b16 %v902
    %v1181 = vunpack.c.l.b16 %v903
    %v1182 = vunpack.c.h.b16 %v903
    %v1183 = vunpack.c.l.b16 %v904
    %v1184 = vunpack.c.h.b16 %v904
    %v1185 = vunpack.c.l.b16 %v905
    %v1186 = vunpack.c.h.b16 %v905
    %v1187 = vunpack.c.l.b16 %v906
    %v1188 = vunpack.c.h.b16 %v906
    %v1189 = vunpack.c.l.b16 %v907
    %v1190 = vunpack.c.h.b16 %v907
    %v1191 = vunpack.c.l.b16 %v908
    %v1192 = vunpack.c.h.b16 %v908
    %v1193 = vunpack.c.l.b16 %v909
    %v1194 = vunpack.c.h.b16 %v909
    %v1195 = vunpack.c.l.b16 %v910
    %v1196 = vunpack.c.h.b16 %v910
    %v1197 = vunpack.c.l.b16 %v911
    %v1198 = vunpack.c.h.b16 %v911
    %v1199 = vunpack.c.l.b16 %v912
    %v1200 = vunpack.c.h.b16 %v912
    %v1201 = vunpack.c.l.b16 %v913
    %v1202 = vunpack.c.h.b16 %v913
    %v1203 = vunpack.c.l.b16 %v914
    %v1204 = vunpack.c.h.b16 %v914
    %v1205 = vunpack.c.l.b16 %v915
    %v1206 = vunpack.c.h.b16 %v915
    %v1207 = vunpack.c.l.b16 %v916
    %v1208 = vunpack.c.h.b16 %v916
    %v1209 = vunpack.c.l.b16 %v917
    %v1210 = vunpack.c.h.b16 %v917
    %v1211 = vunpack.c.l.b16 %v918
    %v1212 = vunpack.c.h.b16 %v918
    %v1213 = vunpack.c.l.b16 %v919
    %v1214 = vunpack.c.h.b16 %v919
    %v1215 = vunpack.c.l.b16 %v920
    %v1216 = vunpack.c.h.b16 %v920
    %v1217 = vunpack.c.l.b16 %v921
    %v1218 = vunpack.c.h.b16 %v921
    %v1219 = vunpack.c.l.b16 %v922
    %v1220 = vunpack.c.h.b16 %v922
    %v1221 = vunpack.c.l.b16 %v923
    %v1222 = vunpack.c.h.b16 %v923
    %v1223 = vunpack.c.l.b16 %v924
    %v1224 = vunpack.c.h.b16 %v924
    %v1225 = vunpack.c.l.b16 %v925
    %v1226 = vunpack.c.h.b16 %v925
    %v1227 = vunpack.c.l.b16 %v926
    %v1228 = vunpack.c.h.b16 %v926
    %v1229 = vunpack.c.l.b16 %v927
    %v1230 = vunpack.c.h.b16 %v927
    %v1231 = vunpack.c.l.b16 %v928
    %v1232 = vunpack.c.h.b16 %v928
    %v1233 = vpack.c.b16 %v1171, %v1169
    %v1234 = vpack.c.b16 %v1172, %v1170
    %v1235 = vpack.c.b16 %v1175, %v1173
    %v1236 = vpack.c.b16 %v1176, %v1174
    %v1237 = vpack.c.b16 %v1179, %v1177
    %v1238 = vpack.c.b16 %v1180, %v1178
    %v1239 = vpack.c.b16 %v1183, %v1181
    %v1240 = vpack.c.b16 %v1184, %v1182
    %v1241 = vpack.c.b16 %v1187, %v1185
    %v1242 = vpack.c.b16 %v1188, %v1186
    %v1243 = vpack.c.b16 %v1191, %v1189
    %v1244 = vpack.c.b16 %v1192, %v1190
    %v1245 = vpack.c.b16 %v1195, %v1193
    %v1246 = vpack.c.b16 %v1196, %v1194
    %v1247 = vpack.c.b16 %v1199, %v1197
    %v1248 = vpack.c.b16 %v1200, %v1198
    %v1249 = vpack.c.b16 %v1203, %v1201
    %v1250 = vpack.c.b16 %v1204, %v1202
    %v1251 = vpack.c.b16 %v1207, %v1205
    %v1252 = vpack.c.b16 %v1208, %v1206
    %v1253 = vpack.c.b16 %v1211, %v1209
    %v1254 = vpack.c.b16 %v1212, %v1210
    %v1255 = vpack.c.b16 %v1215, %v1213
    %v1256 = vpack.c.b16 %v1216, %v1214
    %v1257 = vpack.c.b16 %v1219, %v1217
    %v1258 = vpack.c.b16 %v1220, %v1218
    %v1259 = vpack.c.b16 %v1223, %v1221
    %v1260 = vpack.c.b16 %v1224, %v1222
    %v1261 = vpack.c.b16 %v1227, %v1225
    %v1262 = vpack.c.b16 %v1228, %v1226
    %v1263 = vpack.c.b16 %v1231, %v1229
    %v1264 = vpack.c.b16 %v1232, %v1230
    %1297 = vmatpush.bf16.msra.mxu0 %v936
    %1298 = vmatpush.bf16.msra.mxu0 %v935
    %1299 = vmatpush.bf16.msra.mxu0 %v934
    %1300 = vmatpush.bf16.msra.mxu0 %v933
    %1301 = vmatpush.bf16.msra.mxu0 %v932
    %1302 = vmatpush.bf16.msra.mxu0 %v931
    %1303 = vmatpush.bf16.msra.mxu0 %v930
    %1304 = vmatpush.bf16.msra.mxu0 %v929
    %1305 = vmatmul.bf16.gmra.mxu0 %v1233
    %v1306 = vpop.f32.mrf.mxu0
    %v1307 = vadd.f32 %v980, %v1306
    %v1308 = vpop.f32.mrf.mxu0
    %v1309 = vadd.f32 %v985, %v1308
    %1310 = vmatmul.bf16.gmra.mxu0 %v1235
    %v1311 = vpop.f32.mrf.mxu0
    %v1312 = vadd.f32 %v990, %v1311
    %v1313 = vpop.f32.mrf.mxu0
    %v1314 = vadd.f32 %v995, %v1313
    %1315 = vmatmul.bf16.gmra.mxu0 %v1237
    %v1316 = vpop.f32.mrf.mxu0
    %v1317 = vadd.f32 %v1000, %v1316
    %v1318 = vpop.f32.mrf.mxu0
    %v1319 = vadd.f32 %v1005, %v1318
    %1320 = vmatmul.bf16.gmra.mxu0 %v1239
    %v1321 = vpop.f32.mrf.mxu0
    %v1322 = vadd.f32 %v1010, %v1321
    %v1323 = vpop.f32.mrf.mxu0
    %v1324 = vadd.f32 %v1015, %v1323
    %1325 = vmatmul.bf16.gmra.mxu0 %v1241
    %v1326 = vpop.f32.mrf.mxu0
    %v1327 = vadd.f32 %v1020, %v1326
    %v1328 = vpop.f32.mrf.mxu0
    %v1329 = vadd.f32 %v1025, %v1328
    %1330 = vmatmul.bf16.gmra.mxu0 %v1243
    %v1331 = vpop.f32.mrf.mxu0
    %v1332 = vadd.f32 %v1030, %v1331
    %v1333 = vpop.f32.mrf.mxu0
    %v1334 = vadd.f32 %v1035, %v1333
    %1335 = vmatmul.bf16.gmra.mxu0 %v1245
    %v1336 = vpop.f32.mrf.mxu0
    %v1337 = vadd.f32 %v1040, %v1336
    %v1338 = vpop.f32.mrf.mxu0
    %v1339 = vadd.f32 %v1045, %v1338
    %1340 = vmatmul.bf16.gmra.mxu0 %v1247
    %v1341 = vpop.f32.mrf.mxu0
    %v1342 = vadd.f32 %v1050, %v1341
    %v1343 = vpop.f32.mrf.mxu0
    %v1344 = vadd.f32 %v1055, %v1343
    %1345 = vmatmul.bf16.gmra.mxu0 %v1249
    %v1346 = vpop.f32.mrf.mxu0
    %v1347 = vadd.f32 %v1060, %v1346
    %v1348 = vpop.f32.mrf.mxu0
    %v1349 = vadd.f32 %v1065, %v1348
    %1350 = vmatmul.bf16.gmra.mxu0 %v1251
    %v1351 = vpop.f32.mrf.mxu0
    %v1352 = vadd.f32 %v1070, %v1351
    %v1353 = vpop.f32.mrf.mxu0
    %v1354 = vadd.f32 %v1075, %v1353
    %1355 = vmatmul.bf16.gmra.mxu0 %v1253
    %v1356 = vpop.f32.mrf.mxu0
    %v1357 = vadd.f32 %v1080, %v1356
    %v1358 = vpop.f32.mrf.mxu0
    %v1359 = vadd.f32 %v1085, %v1358
    %1360 = vmatmul.bf16.gmra.mxu0 %v1255
    %v1361 = vpop.f32.mrf.mxu0
    %v1362 = vadd.f32 %v1090, %v1361
    %v1363 = vpop.f32.mrf.mxu0
    %v1364 = vadd.f32 %v1095, %v1363
    %1365 = vmatmul.bf16.gmra.mxu0 %v1257
    %v1366 = vpop.f32.mrf.mxu0
    %v1367 = vadd.f32 %v1100, %v1366
    %v1368 = vpop.f32.mrf.mxu0
    %v1369 = vadd.f32 %v1105, %v1368
    %1370 = vmatmul.bf16.gmra.mxu0 %v1259
    %v1371 = vpop.f32.mrf.mxu0
    %v1372 = vadd.f32 %v1110, %v1371
    %v1373 = vpop.f32.mrf.mxu0
    %v1374 = vadd.f32 %v1115, %v1373
    %1375 = vmatmul.bf16.gmra.mxu0 %v1261
    %v1376 = vpop.f32.mrf.mxu0
    %v1377 = vadd.f32 %v1120, %v1376
    %v1378 = vpop.f32.mrf.mxu0
    %v1379 = vadd.f32 %v1125, %v1378
    %1380 = vmatmul.bf16.gmra.mxu0 %v1263
    %v1381 = vpop.f32.mrf.mxu0
    %v1382 = vadd.f32 %v1130, %v1381
    %v1383 = vpop.f32.mrf.mxu0
    %v1384 = vadd.f32 %v1135, %v1383
    %1385 = vdwg.mxu0
    %1386 = vmatpush.bf16.msra.mxu0 %v944
    %1387 = vmatpush.bf16.msra.mxu0 %v943
    %1388 = vmatpush.bf16.msra.mxu0 %v942
    %1389 = vmatpush.bf16.msra.mxu0 %v941
    %1390 = vmatpush.bf16.msra.mxu0 %v940
    %1391 = vmatpush.bf16.msra.mxu0 %v939
    %1392 = vmatpush.bf16.msra.mxu0 %v938
    %1393 = vmatpush.bf16.msra.mxu0 %v937
    %1394 = vmatmul.bf16.gmra.mxu0 %v1234
    %v1395 = vpop.f32.mrf.mxu0
    %v1396 = vadd.f32 %v1307, %v1395
    %v1397 = vpop.f32.mrf.mxu0
    %v1398 = vadd.f32 %v1309, %v1397
    %1399 = vmatmul.bf16.gmra.mxu0 %v1236
    %v1400 = vpop.f32.mrf.mxu0
    %v1401 = vadd.f32 %v1312, %v1400
    %v1402 = vpop.f32.mrf.mxu0
    %v1403 = vadd.f32 %v1314, %v1402
    %1404 = vmatmul.bf16.gmra.mxu0 %v1238
    %v1405 = vpop.f32.mrf.mxu0
    %v1406 = vadd.f32 %v1317, %v1405
    %v1407 = vpop.f32.mrf.mxu0
    %v1408 = vadd.f32 %v1319, %v1407
    %1409 = vmatmul.bf16.gmra.mxu0 %v1240
    %v1410 = vpop.f32.mrf.mxu0
    %v1411 = vadd.f32 %v1322, %v1410
    %v1412 = vpop.f32.mrf.mxu0
    %v1413 = vadd.f32 %v1324, %v1412
    %1414 = vmatmul.bf16.gmra.mxu0 %v1242
    %v1415 = vpop.f32.mrf.mxu0
    %v1416 = vadd.f32 %v1327, %v1415
    %v1417 = vpop.f32.mrf.mxu0
    %v1418 = vadd.f32 %v1329, %v1417
    %1419 = vmatmul.bf16.gmra.mxu0 %v1244
    %v1420 = vpop.f32.mrf.mxu0
    %v1421 = vadd.f32 %v1332, %v1420
    %v1422 = vpop.f32.mrf.mxu0
    %v1423 = vadd.f32 %v1334, %v1422
    %1424 = vmatmul.bf16.gmra.mxu0 %v1246
    %v1425 = vpop.f32.mrf.mxu0
    %v1426 = vadd.f32 %v1337, %v1425
    %v1427 = vpop.f32.mrf.mxu0
    %v1428 = vadd.f32 %v1339, %v1427
    %1429 = vmatmul.bf16.gmra.mxu0 %v1248
    %v1430 = vpop.f32.mrf.mxu0
    %v1431 = vadd.f32 %v1342, %v1430
    %v1432 = vpop.f32.mrf.mxu0
    %v1433 = vadd.f32 %v1344, %v1432
    %1434 = vmatmul.bf16.gmra.mxu0 %v1250
    %v1435 = vpop.f32.mrf.mxu0
    %v1436 = vadd.f32 %v1347, %v1435
    %v1437 = vpop.f32.mrf.mxu0
    %v1438 = vadd.f32 %v1349, %v1437
    %1439 = vmatmul.bf16.gmra.mxu0 %v1252
    %v1440 = vpop.f32.mrf.mxu0
    %v1441 = vadd.f32 %v1352, %v1440
    %v1442 = vpop.f32.mrf.mxu0
    %v1443 = vadd.f32 %v1354, %v1442
    %1444 = vmatmul.bf16.gmra.mxu0 %v1254
    %v1445 = vpop.f32.mrf.mxu0
    %v1446 = vadd.f32 %v1357, %v1445
    %v1447 = vpop.f32.mrf.mxu0
    %v1448 = vadd.f32 %v1359, %v1447
    %1449 = vmatmul.bf16.gmra.mxu0 %v1256
    %v1450 = vpop.f32.mrf.mxu0
    %v1451 = vadd.f32 %v1362, %v1450
    %v1452 = vpop.f32.mrf.mxu0
    %v1453 = vadd.f32 %v1364, %v1452
    %1454 = vmatmul.bf16.gmra.mxu0 %v1258
    %v1455 = vpop.f32.mrf.mxu0
    %v1456 = vadd.f32 %v1367, %v1455
    %v1457 = vpop.f32.mrf.mxu0
    %v1458 = vadd.f32 %v1369, %v1457
    %1459 = vmatmul.bf16.gmra.mxu0 %v1260
    %v1460 = vpop.f32.mrf.mxu0
    %v1461 = vadd.f32 %v1372, %v1460
    %v1462 = vpop.f32.mrf.mxu0
    %v1463 = vadd.f32 %v1374, %v1462
    %1464 = vmatmul.bf16.gmra.mxu0 %v1262
    %v1465 = vpop.f32.mrf.mxu0
    %v1466 = vadd.f32 %v1377, %v1465
    %v1467 = vpop.f32.mrf.mxu0
    %v1468 = vadd.f32 %v1379, %v1467
    %1469 = vmatmul.bf16.gmra.mxu0 %v1264
    %v1470 = vpop.f32.mrf.mxu0
    %v1471 = vadd.f32 %v1382, %v1470
    %v1472 = vpop.f32.mrf.mxu0
    %v1473 = vadd.f32 %v1384, %v1472
    %1474 = vdwg.mxu0
    %v1475 = vmax.f32 %v1396, 0.0
    %v1476 = vmax.f32 %v1398, 0.0
    %v1477 = vmax.f32 %v1401, 0.0
    %v1478 = vmax.f32 %v1403, 0.0
    %v1479 = vmax.f32 %v1406, 0.0
    %v1480 = vmax.f32 %v1408, 0.0
    %v1481 = vmax.f32 %v1411, 0.0
    %v1482 = vmax.f32 %v1413, 0.0
    %v1483 = vmax.f32 %v1416, 0.0
    %v1484 = vmax.f32 %v1418, 0.0
    %v1485 = vmax.f32 %v1421, 0.0
    %v1486 = vmax.f32 %v1423, 0.0
    %v1487 = vmax.f32 %v1426, 0.0
    %v1488 = vmax.f32 %v1428, 0.0
    %v1489 = vmax.f32 %v1431, 0.0
    %v1490 = vmax.f32 %v1433, 0.0
    %v1491 = vmax.f32 %v1436, 0.0
    %v1492 = vmax.f32 %v1438, 0.0
    %v1493 = vmax.f32 %v1441, 0.0
    %v1494 = vmax.f32 %v1443, 0.0
    %v1495 = vmax.f32 %v1446, 0.0
    %v1496 = vmax.f32 %v1448, 0.0
    %v1497 = vmax.f32 %v1451, 0.0
    %v1498 = vmax.f32 %v1453, 0.0
    %v1499 = vmax.f32 %v1456, 0.0
    %v1500 = vmax.f32 %v1458, 0.0
    %v1501 = vmax.f32 %v1461, 0.0
    %v1502 = vmax.f32 %v1463, 0.0
    %v1503 = vmax.f32 %v1466, 0.0
    %v1504 = vmax.f32 %v1468, 0.0
    %v1505 = vmax.f32 %v1471, 0.0
    %v1506 = vmax.f32 %v1473, 0.0
    %v1507 = vld [vmem:[%s5] sm:$0xff]
    %v1508 = vld [vmem:[%s5 + $0x8] sm:$0xff]
    %v1509 = vld [vmem:[%s5 + $0x10] sm:$0xff]
    %v1510 = vld [vmem:[%s5 + $0x18] sm:$0xff]
    %v1511 = vld [vmem:[%s5 + $0x20] sm:$0xff]
    %v1512 = vld [vmem:[%s5 + $0x28] sm:$0xff]
    %v1513 = vld [vmem:[%s5 + $0x30] sm:$0xff]
    %v1514 = vld [vmem:[%s5 + $0x38] sm:$0xff]
    %v1515 = vld [vmem:[%s5 + $0x40] sm:$0xff]
    %v1516 = vld [vmem:[%s5 + $0x48] sm:$0xff]
    %v1517 = vld [vmem:[%s5 + $0x50] sm:$0xff]
    %v1518 = vld [vmem:[%s5 + $0x58] sm:$0xff]
    %v1519 = vld [vmem:[%s5 + $0x60] sm:$0xff]
    %v1520 = vld [vmem:[%s5 + $0x68] sm:$0xff]
    %v1521 = vld [vmem:[%s5 + $0x70] sm:$0xff]
    %v1522 = vld [vmem:[%s5 + $0x78] sm:$0xff]
    %v1523 = vld [vmem:[%s5 + $0x80] sm:$0xff]
    %v1524 = vld [vmem:[%s5 + $0x88] sm:$0xff]
    %v1525 = vld [vmem:[%s5 + $0x90] sm:$0xff]
    %v1526 = vld [vmem:[%s5 + $0x98] sm:$0xff]
    %v1527 = vld [vmem:[%s5 + $0xa0] sm:$0xff]
    %v1528 = vld [vmem:[%s5 + $0xa8] sm:$0xff]
    %v1529 = vld [vmem:[%s5 + $0xb0] sm:$0xff]
    %v1530 = vld [vmem:[%s5 + $0xb8] sm:$0xff]
    %v1531 = vld [vmem:[%s5 + $0xc0] sm:$0xff]
    %v1532 = vld [vmem:[%s5 + $0xc8] sm:$0xff]
    %v1533 = vld [vmem:[%s5 + $0xd0] sm:$0xff]
    %v1534 = vld [vmem:[%s5 + $0xd8] sm:$0xff]
    %v1535 = vld [vmem:[%s5 + $0xe0] sm:$0xff]
    %v1536 = vld [vmem:[%s5 + $0xe8] sm:$0xff]
    %v1537 = vld [vmem:[%s5 + $0xf0] sm:$0xff]
    %v1538 = vld [vmem:[%s5 + $0xf8] sm:$0xff]
    %1540 = vset.pattern.permute.xlu0 0
    %1541 = vperm.xlu0 %1540, %v1507
    %v1542 = vpop.permute.xlu0 %1541
    %1545 = vset.pattern.permute.xlu0 0
    %1546 = vperm.xlu0 %1545, %v1508
    %v1547 = vpop.permute.xlu0 %1546
    %1550 = vset.pattern.permute.xlu0 0
    %1551 = vperm.xlu0 %1550, %v1509
    %v1552 = vpop.permute.xlu0 %1551
    %1555 = vset.pattern.permute.xlu0 0
    %1556 = vperm.xlu0 %1555, %v1510
    %v1557 = vpop.permute.xlu0 %1556
    %1560 = vset.pattern.permute.xlu0 0
    %1561 = vperm.xlu0 %1560, %v1511
    %v1562 = vpop.permute.xlu0 %1561
    %1565 = vset.pattern.permute.xlu0 0
    %1566 = vperm.xlu0 %1565, %v1512
    %v1567 = vpop.permute.xlu0 %1566
    %1570 = vset.pattern.permute.xlu0 0
    %1571 = vperm.xlu0 %1570, %v1513
    %v1572 = vpop.permute.xlu0 %1571
    %1575 = vset.pattern.permute.xlu0 0
    %1576 = vperm.xlu0 %1575, %v1514
    %v1577 = vpop.permute.xlu0 %1576
    %1580 = vset.pattern.permute.xlu0 0
    %1581 = vperm.xlu0 %1580, %v1515
    %v1582 = vpop.permute.xlu0 %1581
    %1585 = vset.pattern.permute.xlu0 0
    %1586 = vperm.xlu0 %1585, %v1516
    %v1587 = vpop.permute.xlu0 %1586
    %1590 = vset.pattern.permute.xlu0 0
    %1591 = vperm.xlu0 %1590, %v1517
    %v1592 = vpop.permute.xlu0 %1591
    %1595 = vset.pattern.permute.xlu0 0
    %1596 = vperm.xlu0 %1595, %v1518
    %v1597 = vpop.permute.xlu0 %1596
    %1600 = vset.pattern.permute.xlu0 0
    %1601 = vperm.xlu0 %1600, %v1519
    %v1602 = vpop.permute.xlu0 %1601
    %1605 = vset.pattern.permute.xlu0 0
    %1606 = vperm.xlu0 %1605, %v1520
    %v1607 = vpop.permute.xlu0 %1606
    %1610 = vset.pattern.permute.xlu0 0
    %1611 = vperm.xlu0 %1610, %v1521
    %v1612 = vpop.permute.xlu0 %1611
    %1615 = vset.pattern.permute.xlu0 0
    %1616 = vperm.xlu0 %1615, %v1522
    %v1617 = vpop.permute.xlu0 %1616
    %1620 = vset.pattern.permute.xlu0 0
    %1621 = vperm.xlu0 %1620, %v1523
    %v1622 = vpop.permute.xlu0 %1621
    %1625 = vset.pattern.permute.xlu0 0
    %1626 = vperm.xlu0 %1625, %v1524
    %v1627 = vpop.permute.xlu0 %1626
    %1630 = vset.pattern.permute.xlu0 0
    %1631 = vperm.xlu0 %1630, %v1525
    %v1632 = vpop.permute.xlu0 %1631
    %1635 = vset.pattern.permute.xlu0 0
    %1636 = vperm.xlu0 %1635, %v1526
    %v1637 = vpop.permute.xlu0 %1636
    %1640 = vset.pattern.permute.xlu0 0
    %1641 = vperm.xlu0 %1640, %v1527
    %v1642 = vpop.permute.xlu0 %1641
    %1645 = vset.pattern.permute.xlu0 0
    %1646 = vperm.xlu0 %1645, %v1528
    %v1647 = vpop.permute.xlu0 %1646
    %1650 = vset.pattern.permute.xlu0 0
    %1651 = vperm.xlu0 %1650, %v1529
    %v1652 = vpop.permute.xlu0 %1651
    %1655 = vset.pattern.permute.xlu0 0
    %1656 = vperm.xlu0 %1655, %v1530
    %v1657 = vpop.permute.xlu0 %1656
    %1660 = vset.pattern.permute.xlu0 0
    %1661 = vperm.xlu0 %1660, %v1531
    %v1662 = vpop.permute.xlu0 %1661
    %1665 = vset.pattern.permute.xlu0 0
    %1666 = vperm.xlu0 %1665, %v1532
    %v1667 = vpop.permute.xlu0 %1666
    %1670 = vset.pattern.permute.xlu0 0
    %1671 = vperm.xlu0 %1670, %v1533
    %v1672 = vpop.permute.xlu0 %1671
    %1675 = vset.pattern.permute.xlu0 0
    %1676 = vperm.xlu0 %1675, %v1534
    %v1677 = vpop.permute.xlu0 %1676
    %1680 = vset.pattern.permute.xlu0 0
    %1681 = vperm.xlu0 %1680, %v1535
    %v1682 = vpop.permute.xlu0 %1681
    %1685 = vset.pattern.permute.xlu0 0
    %1686 = vperm.xlu0 %1685, %v1536
    %v1687 = vpop.permute.xlu0 %1686
    %1690 = vset.pattern.permute.xlu0 0
    %1691 = vperm.xlu0 %1690, %v1537
    %v1692 = vpop.permute.xlu0 %1691
    %1695 = vset.pattern.permute.xlu0 0
    %1696 = vperm.xlu0 %1695, %v1538
    %v1697 = vpop.permute.xlu0 %1696
    %v1699 = vmul.f32 %v1475, %v1542
    %v1700 = vmul.f32 %v1476, %v1547
    %v1701 = vmul.f32 %v1477, %v1552
    %v1702 = vmul.f32 %v1478, %v1557
    %v1703 = vmul.f32 %v1479, %v1562
    %v1704 = vmul.f32 %v1480, %v1567
    %v1705 = vmul.f32 %v1481, %v1572
    %v1706 = vmul.f32 %v1482, %v1577
    %v1707 = vmul.f32 %v1483, %v1582
    %v1708 = vmul.f32 %v1484, %v1587
    %v1709 = vmul.f32 %v1485, %v1592
    %v1710 = vmul.f32 %v1486, %v1597
    %v1711 = vmul.f32 %v1487, %v1602
    %v1712 = vmul.f32 %v1488, %v1607
    %v1713 = vmul.f32 %v1489, %v1612
    %v1714 = vmul.f32 %v1490, %v1617
    %v1715 = vmul.f32 %v1491, %v1622
    %v1716 = vmul.f32 %v1492, %v1627
    %v1717 = vmul.f32 %v1493, %v1632
    %v1718 = vmul.f32 %v1494, %v1637
    %v1719 = vmul.f32 %v1495, %v1642
    %v1720 = vmul.f32 %v1496, %v1647
    %v1721 = vmul.f32 %v1497, %v1652
    %v1722 = vmul.f32 %v1498, %v1657
    %v1723 = vmul.f32 %v1499, %v1662
    %v1724 = vmul.f32 %v1500, %v1667
    %v1725 = vmul.f32 %v1501, %v1672
    %v1726 = vmul.f32 %v1502, %v1677
    %v1727 = vmul.f32 %v1503, %v1682
    %v1728 = vmul.f32 %v1504, %v1687
    %v1729 = vmul.f32 %v1505, %v1692
    %v1730 = vmul.f32 %v1506, %v1697
    %v1731 = vadd.f32 %v1699, %v1700
    %v1732 = vadd.f32 %v1731, %v1701
    %v1733 = vadd.f32 %v1732, %v1702
    %v1734 = vadd.f32 %v1733, %v1703
    %v1735 = vadd.f32 %v1734, %v1704
    %v1736 = vadd.f32 %v1735, %v1705
    %v1737 = vadd.f32 %v1736, %v1706
    %v1738 = vadd.f32 %v1737, %v1707
    %v1739 = vadd.f32 %v1738, %v1708
    %v1740 = vadd.f32 %v1739, %v1709
    %v1741 = vadd.f32 %v1740, %v1710
    %v1742 = vadd.f32 %v1741, %v1711
    %v1743 = vadd.f32 %v1742, %v1712
    %v1744 = vadd.f32 %v1743, %v1713
    %v1745 = vadd.f32 %v1744, %v1714
    %v1746 = vadd.f32 %v1745, %v1715
    %v1747 = vadd.f32 %v1746, %v1716
    %v1748 = vadd.f32 %v1747, %v1717
    %v1749 = vadd.f32 %v1748, %v1718
    %v1750 = vadd.f32 %v1749, %v1719
    %v1751 = vadd.f32 %v1750, %v1720
    %v1752 = vadd.f32 %v1751, %v1721
    %v1753 = vadd.f32 %v1752, %v1722
    %v1754 = vadd.f32 %v1753, %v1723
    %v1755 = vadd.f32 %v1754, %v1724
    %v1756 = vadd.f32 %v1755, %v1725
    %v1757 = vadd.f32 %v1756, %v1726
    %v1758 = vadd.f32 %v1757, %v1727
    %v1759 = vadd.f32 %v1758, %v1728
    %v1760 = vadd.f32 %v1759, %v1729
    %v1761 = vadd.f32 %v1760, %v1730
    %v1762 = vrot.slane %v1761, 4
    %v1763 = vadd.f32 %v1761, %v1762
    %v1764 = vrot.slane %v1763, 2
    %v1765 = vadd.f32 %v1763, %v1764
    %v1766 = vrot.slane %v1765, 1
    %v1767 = vadd.f32 %v1765, %v1766
    %v1768 = vld [vmem:[#allocation2] sm:$0x1]
    %1770 = vset.pattern.permute.xlu0 0
    %1771 = vperm.xlu0 %1770, %v1768
    %v1772 = vpop.permute.xlu0 %1771
    %v1774 = vperm.slane %v1772, 0
    %v1775 = vadd.f32 %v1767, %v1774
    %v1776 = vtanh.pop %v1775
    %v1777 = vmul.f32 %v1776, 2.0
    %1778 = vst [vmem:[#allocation3] sm:$0x1] %v1777
    // Predicated region
    $region30: #{tpu_custom_call.1} parent=1 // pred_check
      _
    $region31: #{tpu_custom_call.1} parent=1 // pred_check_branch
      %1780 = sbr.rel (0) target = $region33
    $region32: #{tpu_custom_call.1} parent=1 // pred_region
      %1782 = vsyncadd [#allocation4], 0
      %s1784 = sshll.u32 [#allocation3], 4
      %s1785 = int_to_ptr.vmem [resolvable:$true] %s1784
      %s1786 = sshll.u32 %s7, 4
      %s1787 = int_to_ptr.hbm [resolvable:$true] %s1786
      %1789 = dma.vmem_to_hbm [thread:$0]  %s1785, 16, %s1787, [#allocation4]
    $region33: #{tpu_custom_call.1} parent=1 // pred_fallthru
      _
    // Predicated region
    $region34: #{tpu_custom_call.1} parent=1 // pred_check
      _
    $region35: #{tpu_custom_call.1} parent=1 // pred_check_branch
      %1791 = sbr.rel (0) target = $region37
    $region36: #{tpu_custom_call.1} parent=1 // pred_region
      %1793 = dma.done [#allocation4], 16
    $region37: #{tpu_custom_call.1} parent=1 // pred_fallthru
      _
    %1794 = vsyncpa [#allocation4], 1

</llo_original>
